<compile_context>
chip_gen: v7x
topology: tpu7x:2x2x1
jax: 0.10.0
libtpu: 0.0.40
codegen_flags: <defaults>
</compile_context>

<pallas_src>
import math

import jax
import jax.numpy as jnp
from jax import lax
from jax.experimental import pallas as pl
from jax.experimental.pallas import tpu as pltpu  # noqa: F401  (TPU backend assumed)

# ---------------- config (small synthetic shapes) ----------------
B = 2           # batch
T = 8           # sequence length
C = 32          # n_embd
NH = 4          # n_head
HD = C // NH    # head dim
BT = B * T      # flattened batch*sequence
LORA_R = 4
LORA_A = 8.0
LORA_SCALE = LORA_A / LORA_R
LN_EPS = 1e-5
INV_SQRT_HD = 1.0 / math.sqrt(HD)
NEG_INF = -1e30


def _gelu_exact(x):
    # PyTorch nn.GELU() default: 0.5 * x * (1 + erf(x / sqrt(2)))
    return 0.5 * x * (1.0 + lax.erf(x * (1.0 / math.sqrt(2.0))))


def _layernorm(x, w, b):
    mu = jnp.mean(x, axis=-1, keepdims=True)
    var = jnp.mean((x - mu) ** 2, axis=-1, keepdims=True)
    return (x - mu) * lax.rsqrt(var + LN_EPS) * w + b


def block_kernel(
    x_ref,                                   # (BT, C)
    ln1_w_ref, ln1_b_ref,                    # (1, C)
    w_qkvl_ref, b_qkvl_ref,                  # (C, 4C), (1, 4C)  [Wq/s | Wk | Wv | W_lora_attn]
    w_proj_ref, b_proj_ref,                  # (C, C), (1, C)
    mask_ref,                                # (BT, BT) additive bias (0 / -1e30)
    ln2_w_ref, ln2_b_ref,                    # (1, C)
    w_fcl_ref, b_fcl_ref,                    # (C, 5C), (1, 5C)  [c_fc | W_lora_mlp]
    w_cproj_ref, b_cproj_ref,                # (4C, C), (1, C)
    o_ref,                                   # (BT, C)
):
    x = x_ref[...]                                            # (BT, C)

    # ---------------- attention sub-block ----------------
    xn = _layernorm(x, ln1_w_ref[...], ln1_b_ref[...])        # (BT, C)

    # Single fused 128-lane matmul: [q*inv_sqrt(HD) | k | v | attn_lora]
    h = jnp.dot(xn, w_qkvl_ref[...],
                preferred_element_type=jnp.float32) + b_qkvl_ref[...]   # (BT, 4C)
    attn_lora = h[:, 3 * C:4 * C]                             # (BT, C)

    mask = mask_ref[...]                                      # (BT, BT)

    # Per-head attention (scores are inherently per-head); projections above/below
    # are already fused into full-width matmuls.
    heads = []
    for hh in range(NH):
        qh = h[:, hh * HD:(hh + 1) * HD]                      # (BT, HD), pre-scaled
        kh = h[:, C + hh * HD:C + (hh + 1) * HD]              # (BT, HD)
        vh = h[:, 2 * C + hh * HD:2 * C + (hh + 1) * HD]      # (BT, HD)
        s = jnp.einsum('qd,kd->qk', qh, kh,
                       preferred_element_type=jnp.float32) + mask       # (BT, BT)
        s = s - jnp.max(s, axis=-1, keepdims=True)
        p = jnp.exp(s)
        # exact reciprocal to hold the 1e-4 correctness tolerance
        p = p * pl.reciprocal(jnp.sum(p, axis=-1, keepdims=True), approx=False)
        heads.append(jnp.dot(p, vh, preferred_element_type=jnp.float32))  # (BT, HD)

    # Head-major lane concat matches w_attnproj row order -> single dense projection.
    y = jnp.concatenate(heads, axis=-1)                       # (BT, C)
    attn_out = jnp.dot(y, w_proj_ref[...],
                       preferred_element_type=jnp.float32) + b_proj_ref[...]
    x = x + attn_out + attn_lora

    # ---------------- MLP sub-block ----------------
    xn2 = _layernorm(x, ln2_w_ref[...], ln2_b_ref[...])       # (BT, C)

    # One matmul produces both c_fc activations (lanes [0,4C)) and the merged MLP
    # LoRA path (lanes [4C,5C)); the split sits exactly on the 128-lane boundary.
    h_full = jnp.dot(xn2, w_fcl_ref[...],
                     preferred_element_type=jnp.float32) + b_fcl_ref[...]   # (BT, 5C)
    hdn = _gelu_exact(h_full[:, :4 * C])                      # (BT, 4C)
    mlp_lora = h_full[:, 4 * C:]                              # (BT, C)
    mlp_out = (jnp.dot(hdn, w_cproj_ref[...],
                       preferred_element_type=jnp.float32)
               + b_cproj_ref[...]) + mlp_lora

    o_ref[...] = x + mlp_out


@jax.jit
def block_forward(x, params):
    """x: (B, T, C) float32; params: dict of weight arrays."""
    xf = x.reshape(BT, C)

    # ---- host/XLA-side weight preparation (done once, cheap) ----
    w_qkv, b_qkv = params["w_qkv"], params["b_qkv"]
    w_lora_attn = (params["a_attn"] @ params["b_attn"]) * LORA_SCALE    # (C, C)
    w_lora_mlp = (params["a_mlp"] @ params["b_mlp"]) * LORA_SCALE       # (C, C)

    # Fused [Wq*inv_sqrt(HD) | Wk | Wv | W_lora_attn] -> (C, 4C) = (32, 128)
    w_qkvl = jnp.concatenate(
        [w_qkv[:, 0:C] * INV_SQRT_HD, w_qkv[:, C:2 * C], w_qkv[:, 2 * C:3 * C],
         w_lora_attn], axis=1)
    b_qkvl = jnp.concatenate(
        [b_qkv[:, 0:C] * INV_SQRT_HD, b_qkv[:, C:2 * C], b_qkv[:, 2 * C:3 * C],
         jnp.zeros((1, C), jnp.float32)], axis=1)

    # Merge MLP LoRA into the c_fc matmul: [c_fc | W_lora_mlp] -> (C, 5C)
    w_fcl = jnp.concatenate([params["w_fc"], w_lora_mlp], axis=1)
    b_fcl = jnp.concatenate([params["b_fc"], jnp.zeros((1, C), jnp.float32)], axis=1)

    # Block-diagonal causal additive mask over the flattened B*T axis.
    row = lax.broadcasted_iota(jnp.int32, (BT, BT), 0)
    col = lax.broadcasted_iota(jnp.int32, (BT, BT), 1)
    mask_bias = jnp.where((row // T == col // T) & (col <= row),
                          0.0, NEG_INF).astype(jnp.float32)

    args = (
        xf,
        params["ln1_w"], params["ln1_b"],
        w_qkvl, b_qkvl,
        params["w_attnproj"], params["b_attnproj"],
        mask_bias,
        params["ln2_w"], params["ln2_b"],
        w_fcl, b_fcl,
        params["w_cproj"], params["b_cproj"],
    )

    # Single kernel invocation (no grid): all operands are tiny and fully resident
    # in VMEM; the residual output aliases the activation input buffer (safe only
    # because there is no grid and o_ref is written once at the end).
    out = pl.pallas_call(
        block_kernel,
        out_shape=jax.ShapeDtypeStruct((BT, C), jnp.float32),
        input_output_aliases={0: 0},
    )(*args)
    return out.reshape(B, T, C)


def block_reference(x, p):
    """Pure-JAX reference (unmerged LoRA, per-batch / per-head loops)."""
    def ln(v, w, b):
        mu = jnp.mean(v, axis=-1, keepdims=True)
        var = jnp.mean((v - mu) ** 2, axis=-1, keepdims=True)
        return (v - mu) / jnp.sqrt(var + LN_EPS) * w + b

    out = []
    for bi in range(B):
        xb = x[bi]
        xn = ln(xb, p["ln1_w"], p["ln1_b"])
        qkv = xn @ p["w_qkv"] + p["b_qkv"]
        q, k, v = qkv[:, :C], qkv[:, C:2 * C], qkv[:, 2 * C:]
        heads = []
        mask = jnp.tril(jnp.ones((T, T), bool))
        for h in range(NH):
            qh, kh, vh = (q[:, h * HD:(h + 1) * HD], k[:, h * HD:(h + 1) * HD],
                          v[:, h * HD:(h + 1) * HD])
            att = (qh @ kh.T) / math.sqrt(HD)
            att = jnp.where(mask, att, -jnp.inf)
            att = jax.nn.softmax(att, axis=-1)
            heads.append(att @ vh)
        y = jnp.concatenate(heads, axis=-1)
        attn_out = y @ p["w_attnproj"] + p["b_attnproj"] \
            + (xn @ p["a_attn"]) @ p["b_attn"] * LORA_SCALE
        xb = xb + attn_out
        xn2 = ln(xb, p["ln2_w"], p["ln2_b"])
        lora = (xn2 @ p["a_mlp"]) @ p["b_mlp"] * LORA_SCALE
        hh = jax.nn.gelu(xn2 @ p["w_fc"] + p["b_fc"], approximate=False)
        xb = xb + (hh @ p["w_cproj"] + p["b_cproj"]) + lora
        out.append(xb)
    return jnp.stack(out)


def init_params(key):
    ks = jax.random.split(key, 16)
    std = 0.02
    return {
        "ln1_w": jnp.ones((1, C), jnp.float32),
        "ln1_b": jnp.zeros((1, C), jnp.float32),
        "w_qkv": std * jax.random.normal(ks[0], (C, 3 * C), jnp.float32),
        "b_qkv": std * jax.random.normal(ks[1], (1, 3 * C), jnp.float32),
        "w_attnproj": std * jax.random.normal(ks[2], (C, C), jnp.float32),
        "b_attnproj": std * jax.random.normal(ks[3], (1, C), jnp.float32),
        "a_attn": std * jax.random.normal(ks[4], (C, LORA_R), jnp.float32),
        "b_attn": std * jax.random.normal(ks[5], (LORA_R, C), jnp.float32),
        "ln2_w": jnp.ones((1, C), jnp.float32),
        "ln2_b": jnp.zeros((1, C), jnp.float32),
        "w_fc": std * jax.random.normal(ks[6], (C, 4 * C), jnp.float32),
        "b_fc": std * jax.random.normal(ks[7], (1, 4 * C), jnp.float32),
        "w_cproj": std * jax.random.normal(ks[8], (4 * C, C), jnp.float32),
        "b_cproj": std * jax.random.normal(ks[9], (1, C), jnp.float32),
        "a_mlp": std * jax.random.normal(ks[10], (C, LORA_R), jnp.float32),
        "b_mlp": std * jax.random.normal(ks[11], (LORA_R, C), jnp.float32),
    }


if __name__ == "__main__":
    key = jax.random.PRNGKey(0)
    k_x, k_p = jax.random.split(key)
    x = jax.random.normal(k_x, (B, T, C), jnp.float32)
    params = init_params(k_p)

    out = block_forward(x, params)
    out = jax.block_until_ready(out)

    ref = block_reference(x, params)
    assert out.shape == (B, T, C)
    assert jnp.allclose(out, ref, atol=1e-4, rtol=1e-4), \
        f"max abs err = {jnp.max(jnp.abs(out - ref))}"

    print("KERNEL_OK")
</pallas_src>

<mosaic_0001>
module attributes {stable_mosaic.version = 11 : i64} {
  func.func @block_kernel(%arg0: memref<16x32xf32, #tpu.memory_space<vmem>>, %arg1: memref<1x32xf32, #tpu.memory_space<vmem>>, %arg2: memref<1x32xf32, #tpu.memory_space<vmem>>, %arg3: memref<32x128xf32, #tpu.memory_space<vmem>>, %arg4: memref<1x128xf32, #tpu.memory_space<vmem>>, %arg5: memref<32x32xf32, #tpu.memory_space<vmem>>, %arg6: memref<1x32xf32, #tpu.memory_space<vmem>>, %arg7: memref<16x16xf32, #tpu.memory_space<vmem>>, %arg8: memref<1x32xf32, #tpu.memory_space<vmem>>, %arg9: memref<1x32xf32, #tpu.memory_space<vmem>>, %arg10: memref<32x160xf32, #tpu.memory_space<vmem>>, %arg11: memref<1x160xf32, #tpu.memory_space<vmem>>, %arg12: memref<128x32xf32, #tpu.memory_space<vmem>>, %arg13: memref<1x32xf32, #tpu.memory_space<vmem>>, %arg14: memref<16x32xf32, #tpu.memory_space<vmem>>) attributes {dimension_semantics = [], scalar_prefetch = 0 : i64, scratch_operands = 0 : i64, tpu.core_type = #tpu.core_type<tc>} {
    %c0 = arith.constant 0 : index
    %c0_0 = arith.constant 0 : index
    %0 = vector.load %arg0[%c0, %c0_0] : memref<16x32xf32, #tpu.memory_space<vmem>>, vector<16x32xf32>
    %c0_1 = arith.constant 0 : index
    %c0_2 = arith.constant 0 : index
    %1 = vector.load %arg1[%c0_1, %c0_2] : memref<1x32xf32, #tpu.memory_space<vmem>>, vector<1x32xf32>
    %c0_3 = arith.constant 0 : index
    %c0_4 = arith.constant 0 : index
    %2 = vector.load %arg2[%c0_3, %c0_4] : memref<1x32xf32, #tpu.memory_space<vmem>>, vector<1x32xf32>
    %cst = arith.constant dense<0.000000e+00> : vector<16xf32>
    %3 = vector.multi_reduction <add>, %0, %cst [1] : vector<16x32xf32> to vector<16xf32>
    %4 = vector.shape_cast %3 : vector<16xf32> to vector<16x1xf32>
    %cst_5 = arith.constant 3.200000e+01 : f32
    %5 = vector.broadcast %cst_5 : f32 to vector<16x1xf32>
    %6 = arith.divf %4, %5 : vector<16x1xf32>
    %7 = vector.broadcast %6 : vector<16x1xf32> to vector<16x32xf32>
    %8 = arith.subf %0, %7 : vector<16x32xf32>
    %9 = arith.mulf %8, %8 : vector<16x32xf32>
    %cst_6 = arith.constant dense<0.000000e+00> : vector<16xf32>
    %10 = vector.multi_reduction <add>, %9, %cst_6 [1] : vector<16x32xf32> to vector<16xf32>
    %11 = vector.shape_cast %10 : vector<16xf32> to vector<16x1xf32>
    %cst_7 = arith.constant 3.200000e+01 : f32
    %12 = vector.broadcast %cst_7 : f32 to vector<16x1xf32>
    %13 = arith.divf %11, %12 : vector<16x1xf32>
    %14 = vector.broadcast %6 : vector<16x1xf32> to vector<16x32xf32>
    %15 = arith.subf %0, %14 : vector<16x32xf32>
    %cst_8 = arith.constant 9.99999974E-6 : f32
    %16 = vector.broadcast %cst_8 : f32 to vector<16x1xf32>
    %17 = arith.addf %13, %16 : vector<16x1xf32>
    %18 = math.rsqrt %17 : vector<16x1xf32>
    %19 = vector.broadcast %18 : vector<16x1xf32> to vector<16x32xf32>
    %20 = arith.mulf %15, %19 : vector<16x32xf32>
    %21 = vector.broadcast %1 : vector<1x32xf32> to vector<16x32xf32>
    %22 = arith.mulf %20, %21 : vector<16x32xf32>
    %23 = vector.broadcast %2 : vector<1x32xf32> to vector<16x32xf32>
    %24 = arith.addf %22, %23 : vector<16x32xf32>
    %c0_9 = arith.constant 0 : index
    %c0_10 = arith.constant 0 : index
    %25 = vector.load %arg3[%c0_9, %c0_10] : memref<32x128xf32, #tpu.memory_space<vmem>>, vector<32x128xf32>
    %cst_11 = arith.constant dense<0.000000e+00> : vector<16x128xf32>
    %26 = tpu.matmul %24, %25, %cst_11 {dimension_numbers = #tpu.dot_dimension_numbers<[1], [0], [0], [1], [0, 0, 1, 1], [], []>} : vector<16x32xf32>, vector<32x128xf32>, vector<16x128xf32> -> vector<16x128xf32>
    %c0_12 = arith.constant 0 : index
    %c0_13 = arith.constant 0 : index
    %27 = vector.load %arg4[%c0_12, %c0_13] : memref<1x128xf32, #tpu.memory_space<vmem>>, vector<1x128xf32>
    %28 = vector.broadcast %27 : vector<1x128xf32> to vector<16x128xf32>
    %29 = arith.addf %26, %28 : vector<16x128xf32>
    %30 = vector.extract_strided_slice %29 {offsets = [0, 96], sizes = [16, 32], strides = [1, 1]} : vector<16x128xf32> to vector<16x32xf32>
    %c0_14 = arith.constant 0 : index
    %c0_15 = arith.constant 0 : index
    %31 = vector.load %arg7[%c0_14, %c0_15] : memref<16x16xf32, #tpu.memory_space<vmem>>, vector<16x16xf32>
    %32 = vector.extract_strided_slice %29 {offsets = [0, 0], sizes = [16, 8], strides = [1, 1]} : vector<16x128xf32> to vector<16x8xf32>
    %33 = vector.extract_strided_slice %29 {offsets = [0, 32], sizes = [16, 8], strides = [1, 1]} : vector<16x128xf32> to vector<16x8xf32>
    %34 = vector.extract_strided_slice %29 {offsets = [0, 64], sizes = [16, 8], strides = [1, 1]} : vector<16x128xf32> to vector<16x8xf32>
    "tpu.trace_start"() <{level = 10 : i32, message = "qd,kd->qk"}> : () -> ()
    %cst_16 = arith.constant dense<0.000000e+00> : vector<16x16xf32>
    %35 = tpu.matmul %32, %33, %cst_16 {dimension_numbers = #tpu.dot_dimension_numbers<[1], [1], [0], [0], [0, 0, 1, 0], [], []>} : vector<16x8xf32>, vector<16x8xf32>, vector<16x16xf32> -> vector<16x16xf32>
    "tpu.trace_stop"() : () -> ()
    %36 = arith.addf %35, %31 : vector<16x16xf32>
    %cst_17 = arith.constant dense<0xFF800000> : vector<16xf32>
    %37 = vector.multi_reduction <maximumf>, %36, %cst_17 [1] : vector<16x16xf32> to vector<16xf32>
    %38 = vector.shape_cast %37 : vector<16xf32> to vector<16x1xf32>
    %39 = vector.broadcast %38 : vector<16x1xf32> to vector<16x16xf32>
    %40 = arith.subf %36, %39 : vector<16x16xf32>
    %41 = math.exp %40 : vector<16x16xf32>
    %cst_18 = arith.constant dense<0.000000e+00> : vector<16xf32>
    %42 = vector.multi_reduction <add>, %41, %cst_18 [1] : vector<16x16xf32> to vector<16xf32>
    %43 = vector.shape_cast %42 : vector<16xf32> to vector<16x1xf32>
    %44 = tpu.reciprocal %43 : vector<16x1xf32> -> vector<16x1xf32>
    %45 = vector.broadcast %44 : vector<16x1xf32> to vector<16x16xf32>
    %46 = arith.mulf %41, %45 : vector<16x16xf32>
    %cst_19 = arith.constant dense<0.000000e+00> : vector<16x8xf32>
    %47 = tpu.matmul %46, %34, %cst_19 {dimension_numbers = #tpu.dot_dimension_numbers<[1], [0], [0], [1], [0, 0, 1, 1], [], []>} : vector<16x16xf32>, vector<16x8xf32>, vector<16x8xf32> -> vector<16x8xf32>
    %48 = vector.extract_strided_slice %29 {offsets = [0, 8], sizes = [16, 8], strides = [1, 1]} : vector<16x128xf32> to vector<16x8xf32>
    %49 = vector.extract_strided_slice %29 {offsets = [0, 40], sizes = [16, 8], strides = [1, 1]} : vector<16x128xf32> to vector<16x8xf32>
    %50 = vector.extract_strided_slice %29 {offsets = [0, 72], sizes = [16, 8], strides = [1, 1]} : vector<16x128xf32> to vector<16x8xf32>
    "tpu.trace_start"() <{level = 10 : i32, message = "qd,kd->qk"}> : () -> ()
    %cst_20 = arith.constant dense<0.000000e+00> : vector<16x16xf32>
    %51 = tpu.matmul %48, %49, %cst_20 {dimension_numbers = #tpu.dot_dimension_numbers<[1], [1], [0], [0], [0, 0, 1, 0], [], []>} : vector<16x8xf32>, vector<16x8xf32>, vector<16x16xf32> -> vector<16x16xf32>
    "tpu.trace_stop"() : () -> ()
    %52 = arith.addf %51, %31 : vector<16x16xf32>
    %cst_21 = arith.constant dense<0xFF800000> : vector<16xf32>
    %53 = vector.multi_reduction <maximumf>, %52, %cst_21 [1] : vector<16x16xf32> to vector<16xf32>
    %54 = vector.shape_cast %53 : vector<16xf32> to vector<16x1xf32>
    %55 = vector.broadcast %54 : vector<16x1xf32> to vector<16x16xf32>
    %56 = arith.subf %52, %55 : vector<16x16xf32>
    %57 = math.exp %56 : vector<16x16xf32>
    %cst_22 = arith.constant dense<0.000000e+00> : vector<16xf32>
    %58 = vector.multi_reduction <add>, %57, %cst_22 [1] : vector<16x16xf32> to vector<16xf32>
    %59 = vector.shape_cast %58 : vector<16xf32> to vector<16x1xf32>
    %60 = tpu.reciprocal %59 : vector<16x1xf32> -> vector<16x1xf32>
    %61 = vector.broadcast %60 : vector<16x1xf32> to vector<16x16xf32>
    %62 = arith.mulf %57, %61 : vector<16x16xf32>
    %cst_23 = arith.constant dense<0.000000e+00> : vector<16x8xf32>
    %63 = tpu.matmul %62, %50, %cst_23 {dimension_numbers = #tpu.dot_dimension_numbers<[1], [0], [0], [1], [0, 0, 1, 1], [], []>} : vector<16x16xf32>, vector<16x8xf32>, vector<16x8xf32> -> vector<16x8xf32>
    %64 = vector.extract_strided_slice %29 {offsets = [0, 16], sizes = [16, 8], strides = [1, 1]} : vector<16x128xf32> to vector<16x8xf32>
    %65 = vector.extract_strided_slice %29 {offsets = [0, 48], sizes = [16, 8], strides = [1, 1]} : vector<16x128xf32> to vector<16x8xf32>
    %66 = vector.extract_strided_slice %29 {offsets = [0, 80], sizes = [16, 8], strides = [1, 1]} : vector<16x128xf32> to vector<16x8xf32>
    "tpu.trace_start"() <{level = 10 : i32, message = "qd,kd->qk"}> : () -> ()
    %cst_24 = arith.constant dense<0.000000e+00> : vector<16x16xf32>
    %67 = tpu.matmul %64, %65, %cst_24 {dimension_numbers = #tpu.dot_dimension_numbers<[1], [1], [0], [0], [0, 0, 1, 0], [], []>} : vector<16x8xf32>, vector<16x8xf32>, vector<16x16xf32> -> vector<16x16xf32>
    "tpu.trace_stop"() : () -> ()
    %68 = arith.addf %67, %31 : vector<16x16xf32>
    %cst_25 = arith.constant dense<0xFF800000> : vector<16xf32>
    %69 = vector.multi_reduction <maximumf>, %68, %cst_25 [1] : vector<16x16xf32> to vector<16xf32>
    %70 = vector.shape_cast %69 : vector<16xf32> to vector<16x1xf32>
    %71 = vector.broadcast %70 : vector<16x1xf32> to vector<16x16xf32>
    %72 = arith.subf %68, %71 : vector<16x16xf32>
    %73 = math.exp %72 : vector<16x16xf32>
    %cst_26 = arith.constant dense<0.000000e+00> : vector<16xf32>
    %74 = vector.multi_reduction <add>, %73, %cst_26 [1] : vector<16x16xf32> to vector<16xf32>
    %75 = vector.shape_cast %74 : vector<16xf32> to vector<16x1xf32>
    %76 = tpu.reciprocal %75 : vector<16x1xf32> -> vector<16x1xf32>
    %77 = vector.broadcast %76 : vector<16x1xf32> to vector<16x16xf32>
    %78 = arith.mulf %73, %77 : vector<16x16xf32>
    %cst_27 = arith.constant dense<0.000000e+00> : vector<16x8xf32>
    %79 = tpu.matmul %78, %66, %cst_27 {dimension_numbers = #tpu.dot_dimension_numbers<[1], [0], [0], [1], [0, 0, 1, 1], [], []>} : vector<16x16xf32>, vector<16x8xf32>, vector<16x8xf32> -> vector<16x8xf32>
    %80 = vector.extract_strided_slice %29 {offsets = [0, 24], sizes = [16, 8], strides = [1, 1]} : vector<16x128xf32> to vector<16x8xf32>
    %81 = vector.extract_strided_slice %29 {offsets = [0, 56], sizes = [16, 8], strides = [1, 1]} : vector<16x128xf32> to vector<16x8xf32>
    %82 = vector.extract_strided_slice %29 {offsets = [0, 88], sizes = [16, 8], strides = [1, 1]} : vector<16x128xf32> to vector<16x8xf32>
    "tpu.trace_start"() <{level = 10 : i32, message = "qd,kd->qk"}> : () -> ()
    %cst_28 = arith.constant dense<0.000000e+00> : vector<16x16xf32>
    %83 = tpu.matmul %80, %81, %cst_28 {dimension_numbers = #tpu.dot_dimension_numbers<[1], [1], [0], [0], [0, 0, 1, 0], [], []>} : vector<16x8xf32>, vector<16x8xf32>, vector<16x16xf32> -> vector<16x16xf32>
    "tpu.trace_stop"() : () -> ()
    %84 = arith.addf %83, %31 : vector<16x16xf32>
    %cst_29 = arith.constant dense<0xFF800000> : vector<16xf32>
    %85 = vector.multi_reduction <maximumf>, %84, %cst_29 [1] : vector<16x16xf32> to vector<16xf32>
    %86 = vector.shape_cast %85 : vector<16xf32> to vector<16x1xf32>
    %87 = vector.broadcast %86 : vector<16x1xf32> to vector<16x16xf32>
    %88 = arith.subf %84, %87 : vector<16x16xf32>
    %89 = math.exp %88 : vector<16x16xf32>
    %cst_30 = arith.constant dense<0.000000e+00> : vector<16xf32>
    %90 = vector.multi_reduction <add>, %89, %cst_30 [1] : vector<16x16xf32> to vector<16xf32>
    %91 = vector.shape_cast %90 : vector<16xf32> to vector<16x1xf32>
    %92 = tpu.reciprocal %91 : vector<16x1xf32> -> vector<16x1xf32>
    %93 = vector.broadcast %92 : vector<16x1xf32> to vector<16x16xf32>
    %94 = arith.mulf %89, %93 : vector<16x16xf32>
    %cst_31 = arith.constant dense<0.000000e+00> : vector<16x8xf32>
    %95 = tpu.matmul %94, %82, %cst_31 {dimension_numbers = #tpu.dot_dimension_numbers<[1], [0], [0], [1], [0, 0, 1, 1], [], []>} : vector<16x16xf32>, vector<16x8xf32>, vector<16x8xf32> -> vector<16x8xf32>
    %96 = tpu.concatenate %47, %63, %79, %95 in 1 : vector<16x8xf32>, vector<16x8xf32>, vector<16x8xf32>, vector<16x8xf32> -> vector<16x32xf32>
    %c0_32 = arith.constant 0 : index
    %c0_33 = arith.constant 0 : index
    %97 = vector.load %arg5[%c0_32, %c0_33] : memref<32x32xf32, #tpu.memory_space<vmem>>, vector<32x32xf32>
    %cst_34 = arith.constant dense<0.000000e+00> : vector<16x32xf32>
    %98 = tpu.matmul %96, %97, %cst_34 {dimension_numbers = #tpu.dot_dimension_numbers<[1], [0], [0], [1], [0, 0, 1, 1], [], []>} : vector<16x32xf32>, vector<32x32xf32>, vector<16x32xf32> -> vector<16x32xf32>
    %c0_35 = arith.constant 0 : index
    %c0_36 = arith.constant 0 : index
    %99 = vector.load %arg6[%c0_35, %c0_36] : memref<1x32xf32, #tpu.memory_space<vmem>>, vector<1x32xf32>
    %100 = vector.broadcast %99 : vector<1x32xf32> to vector<16x32xf32>
    %101 = arith.addf %98, %100 : vector<16x32xf32>
    %102 = arith.addf %0, %101 : vector<16x32xf32>
    %103 = arith.addf %102, %30 : vector<16x32xf32>
    %c0_37 = arith.constant 0 : index
    %c0_38 = arith.constant 0 : index
    %104 = vector.load %arg8[%c0_37, %c0_38] : memref<1x32xf32, #tpu.memory_space<vmem>>, vector<1x32xf32>
    %c0_39 = arith.constant 0 : index
    %c0_40 = arith.constant 0 : index
    %105 = vector.load %arg9[%c0_39, %c0_40] : memref<1x32xf32, #tpu.memory_space<vmem>>, vector<1x32xf32>
    %cst_41 = arith.constant dense<0.000000e+00> : vector<16xf32>
    %106 = vector.multi_reduction <add>, %103, %cst_41 [1] : vector<16x32xf32> to vector<16xf32>
    %107 = vector.shape_cast %106 : vector<16xf32> to vector<16x1xf32>
    %cst_42 = arith.constant 3.200000e+01 : f32
    %108 = vector.broadcast %cst_42 : f32 to vector<16x1xf32>
    %109 = arith.divf %107, %108 : vector<16x1xf32>
    %110 = vector.broadcast %109 : vector<16x1xf32> to vector<16x32xf32>
    %111 = arith.subf %103, %110 : vector<16x32xf32>
    %112 = arith.mulf %111, %111 : vector<16x32xf32>
    %cst_43 = arith.constant dense<0.000000e+00> : vector<16xf32>
    %113 = vector.multi_reduction <add>, %112, %cst_43 [1] : vector<16x32xf32> to vector<16xf32>
    %114 = vector.shape_cast %113 : vector<16xf32> to vector<16x1xf32>
    %cst_44 = arith.constant 3.200000e+01 : f32
    %115 = vector.broadcast %cst_44 : f32 to vector<16x1xf32>
    %116 = arith.divf %114, %115 : vector<16x1xf32>
    %117 = vector.broadcast %109 : vector<16x1xf32> to vector<16x32xf32>
    %118 = arith.subf %103, %117 : vector<16x32xf32>
    %cst_45 = arith.constant 9.99999974E-6 : f32
    %119 = vector.broadcast %cst_45 : f32 to vector<16x1xf32>
    %120 = arith.addf %116, %119 : vector<16x1xf32>
    %121 = math.rsqrt %120 : vector<16x1xf32>
    %122 = vector.broadcast %121 : vector<16x1xf32> to vector<16x32xf32>
    %123 = arith.mulf %118, %122 : vector<16x32xf32>
    %124 = vector.broadcast %104 : vector<1x32xf32> to vector<16x32xf32>
    %125 = arith.mulf %123, %124 : vector<16x32xf32>
    %126 = vector.broadcast %105 : vector<1x32xf32> to vector<16x32xf32>
    %127 = arith.addf %125, %126 : vector<16x32xf32>
    %c0_46 = arith.constant 0 : index
    %c0_47 = arith.constant 0 : index
    %128 = vector.load %arg10[%c0_46, %c0_47] : memref<32x160xf32, #tpu.memory_space<vmem>>, vector<32x160xf32>
    %cst_48 = arith.constant dense<0.000000e+00> : vector<16x160xf32>
    %129 = tpu.matmul %127, %128, %cst_48 {dimension_numbers = #tpu.dot_dimension_numbers<[1], [0], [0], [1], [0, 0, 1, 1], [], []>} : vector<16x32xf32>, vector<32x160xf32>, vector<16x160xf32> -> vector<16x160xf32>
    %c0_49 = arith.constant 0 : index
    %c0_50 = arith.constant 0 : index
    %130 = vector.load %arg11[%c0_49, %c0_50] : memref<1x160xf32, #tpu.memory_space<vmem>>, vector<1x160xf32>
    %131 = vector.broadcast %130 : vector<1x160xf32> to vector<16x160xf32>
    %132 = arith.addf %129, %131 : vector<16x160xf32>
    %133 = vector.extract_strided_slice %132 {offsets = [0, 0], sizes = [16, 128], strides = [1, 1]} : vector<16x160xf32> to vector<16x128xf32>
    %cst_51 = arith.constant 5.000000e-01 : f32
    %134 = vector.broadcast %cst_51 : f32 to vector<16x128xf32>
    %135 = arith.mulf %134, %133 : vector<16x128xf32>
    %cst_52 = arith.constant 0.707106769 : f32
    %136 = vector.broadcast %cst_52 : f32 to vector<16x128xf32>
    %137 = arith.mulf %133, %136 : vector<16x128xf32>
    %138 = math.erf %137 : vector<16x128xf32>
    %cst_53 = arith.constant 1.000000e+00 : f32
    %139 = vector.broadcast %cst_53 : f32 to vector<16x128xf32>
    %140 = arith.addf %139, %138 : vector<16x128xf32>
    %141 = arith.mulf %135, %140 : vector<16x128xf32>
    %142 = vector.extract_strided_slice %132 {offsets = [0, 128], sizes = [16, 32], strides = [1, 1]} : vector<16x160xf32> to vector<16x32xf32>
    %c0_54 = arith.constant 0 : index
    %c0_55 = arith.constant 0 : index
    %143 = vector.load %arg12[%c0_54, %c0_55] : memref<128x32xf32, #tpu.memory_space<vmem>>, vector<128x32xf32>
    %cst_56 = arith.constant dense<0.000000e+00> : vector<16x32xf32>
    %144 = tpu.matmul %141, %143, %cst_56 {dimension_numbers = #tpu.dot_dimension_numbers<[1], [0], [0], [1], [0, 0, 1, 1], [], []>} : vector<16x128xf32>, vector<128x32xf32>, vector<16x32xf32> -> vector<16x32xf32>
    %c0_57 = arith.constant 0 : index
    %c0_58 = arith.constant 0 : index
    %145 = vector.load %arg13[%c0_57, %c0_58] : memref<1x32xf32, #tpu.memory_space<vmem>>, vector<1x32xf32>
    %146 = vector.broadcast %145 : vector<1x32xf32> to vector<16x32xf32>
    %147 = arith.addf %144, %146 : vector<16x32xf32>
    %148 = arith.addf %147, %142 : vector<16x32xf32>
    %149 = arith.addf %103, %148 : vector<16x32xf32>
    %c0_59 = arith.constant 0 : index
    %c0_60 = arith.constant 0 : index
    %150 = vector.load %arg14[%c0_59, %c0_60] : memref<16x32xf32, #tpu.memory_space<vmem>>, vector<16x32xf32>
    tpu.vector_store %arg14[%c0_59, %c0_60], %149 {strides = array<i32>} : memref<16x32xf32, #tpu.memory_space<vmem>>, vector<16x32xf32>,
    return
  }
}

</mosaic_0001>

<llo_original>
// kernel: block_forward.1
$region0: #{block_forward.1}
  #allocation0 [shape = 'u32[]', space=smem, size = 0x4, offset = 0x4, fixed_abs, tag = 'smem constant byte address 0x4 - core index']
  #allocation1 [shape = 'u32[144,128]{1,0:T(1,128)}', space=vmem, size = 0x12000, scoped, tag = 'internal scratch']
  %s0 = inlined_call_operand.vmem [shape: f32[16,32], index: 0, kind: input, shape index: {}, may-alias: {0,14}]
  %s1 = inlined_call_operand.vmem [shape: f32[1,32], index: 1, kind: input, shape index: {}]
  %s2 = inlined_call_operand.vmem [shape: f32[1,32], index: 2, kind: input, shape index: {}]
  %s3 = inlined_call_operand.vmem [shape: f32[32,128], index: 3, kind: input, shape index: {}]
  %s4 = inlined_call_operand.vmem [shape: f32[1,128], index: 4, kind: input, shape index: {}]
  %s5 = inlined_call_operand.vmem [shape: f32[32,32], index: 5, kind: input, shape index: {}]
  %s6 = inlined_call_operand.vmem [shape: f32[1,32], index: 6, kind: input, shape index: {}]
  %s7 = inlined_call_operand.vmem [shape: f32[16,16], index: 7, kind: input, shape index: {}]
  %s8 = inlined_call_operand.vmem [shape: f32[1,32], index: 8, kind: input, shape index: {}]
  %s9 = inlined_call_operand.vmem [shape: f32[1,32], index: 9, kind: input, shape index: {}]
  %s10 = inlined_call_operand.vmem [shape: f32[32,160], index: 10, kind: input, shape index: {}]
  %s11 = inlined_call_operand.vmem [shape: f32[1,160], index: 11, kind: input, shape index: {}]
  %s12 = inlined_call_operand.vmem [shape: f32[128,32], index: 12, kind: input, shape index: {}]
  %s13 = inlined_call_operand.vmem [shape: f32[1,32], index: 13, kind: input, shape index: {}]
  %s14 = inlined_call_operand.vmem [shape: f32[16,32], index: 14, kind: output, shape index: {}, may-alias: {0,14}]
  %s15 = sld [smem:[#allocation0]]
  $region66: #{block_forward.1} parent=0
    _
  %s17 = ssub.s32 1, %s15
  %s18 = scalar_select 0, %s17, %s15
  // Predicated region
  $region2: #{block_forward.1} parent=0 // pred_check
    _
  $region3: #{block_forward.1} parent=0 // pred_check_branch
    %20 = sbr.rel (0) target = $region5
  $region4: #{block_forward.1} parent=0 // pred_region
    _
  $region5: #{block_forward.1} parent=0 // pred_fallthru
    _
  // Predicated region
  $region6: #{block_forward.1} parent=0 // pred_check
    _
  $region7: #{block_forward.1} parent=0 // pred_check_branch
    %22 = sbr.rel (0) target = $region9
  $region8: #{block_forward.1} parent=0 // pred_region
    _
  $region9: #{block_forward.1} parent=0 // pred_fallthru
    _
  // Predicated region
  $region10: #{block_forward.1} parent=0 // pred_check
    _
  $region11: #{block_forward.1} parent=0 // pred_check_branch
    %24 = sbr.rel (0) target = $region13
  $region12: #{block_forward.1} parent=0 // pred_region
    _
  $region13: #{block_forward.1} parent=0 // pred_fallthru
    _
  // Predicated region
  $region14: #{block_forward.1} parent=0 // pred_check
    _
  $region15: #{block_forward.1} parent=0 // pred_check_branch
    %26 = sbr.rel (0) target = $region17
  $region16: #{block_forward.1} parent=0 // pred_region
    _
  $region17: #{block_forward.1} parent=0 // pred_fallthru
    _
  // Predicated region
  $region18: #{block_forward.1} parent=0 // pred_check
    _
  $region19: #{block_forward.1} parent=0 // pred_check_branch
    %28 = sbr.rel (0) target = $region21
  $region20: #{block_forward.1} parent=0 // pred_region
    _
  $region21: #{block_forward.1} parent=0 // pred_fallthru
    _
  // Predicated region
  $region22: #{block_forward.1} parent=0 // pred_check
    _
  $region23: #{block_forward.1} parent=0 // pred_check_branch
    %30 = sbr.rel (0) target = $region25
  $region24: #{block_forward.1} parent=0 // pred_region
    _
  $region25: #{block_forward.1} parent=0 // pred_fallthru
    _
  // Predicated region
  $region26: #{block_forward.1} parent=0 // pred_check
    _
  $region27: #{block_forward.1} parent=0 // pred_check_branch
    %32 = sbr.rel (0) target = $region29
  $region28: #{block_forward.1} parent=0 // pred_region
    _
  $region29: #{block_forward.1} parent=0 // pred_fallthru
    _
  // Predicated region
  $region30: #{block_forward.1} parent=0 // pred_check
    _
  $region31: #{block_forward.1} parent=0 // pred_check_branch
    %34 = sbr.rel (0) target = $region33
  $region32: #{block_forward.1} parent=0 // pred_region
    _
  $region33: #{block_forward.1} parent=0 // pred_fallthru
    _
  // Predicated region
  $region34: #{block_forward.1} parent=0 // pred_check
    _
  $region35: #{block_forward.1} parent=0 // pred_check_branch
    %36 = sbr.rel (0) target = $region37
  $region36: #{block_forward.1} parent=0 // pred_region
    _
  $region37: #{block_forward.1} parent=0 // pred_fallthru
    _
  // Predicated region
  $region38: #{block_forward.1} parent=0 // pred_check
    _
  $region39: #{block_forward.1} parent=0 // pred_check_branch
    %38 = sbr.rel (0) target = $region41
  $region40: #{block_forward.1} parent=0 // pred_region
    _
  $region41: #{block_forward.1} parent=0 // pred_fallthru
    _
  // Predicated region
  $region42: #{block_forward.1} parent=0 // pred_check
    _
  $region43: #{block_forward.1} parent=0 // pred_check_branch
    %40 = sbr.rel (0) target = $region45
  $region44: #{block_forward.1} parent=0 // pred_region
    _
  $region45: #{block_forward.1} parent=0 // pred_fallthru
    _
  // Predicated region
  $region46: #{block_forward.1} parent=0 // pred_check
    _
  $region47: #{block_forward.1} parent=0 // pred_check_branch
    %42 = sbr.rel (0) target = $region49
  $region48: #{block_forward.1} parent=0 // pred_region
    _
  $region49: #{block_forward.1} parent=0 // pred_fallthru
    _
  // Predicated region
  $region50: #{block_forward.1} parent=0 // pred_check
    _
  $region51: #{block_forward.1} parent=0 // pred_check_branch
    %44 = sbr.rel (0) target = $region53
  $region52: #{block_forward.1} parent=0 // pred_region
    _
  $region53: #{block_forward.1} parent=0 // pred_fallthru
    _
  // Predicated region
  $region54: #{block_forward.1} parent=0 // pred_check
    _
  $region55: #{block_forward.1} parent=0 // pred_check_branch
    %46 = sbr.rel (0) target = $region57
  $region56: #{block_forward.1} parent=0 // pred_region
    _
  $region57: #{block_forward.1} parent=0 // pred_fallthru
    _
  %v47 = vld [vmem:[%s0] sm:$0xff]
  %v48 = vld [vmem:[%s0 + $0x8] sm:$0xff]
  %v49 = vld [vmem:[%s1] sm:$0x1]
  %v50 = vld [vmem:[%s2] sm:$0x1]
  %vm51 = vcmask 261120
  %v52 = vsel %vm51, %v47, 0.0
  %53 = vadd.xlane.f32.xlu0 %v52
  %v54 = vpop.xlane.xlu0 %53
  %v55 = vsel %vm51, %v48, 0.0
  %56 = vadd.xlane.f32.xlu0 %v55
  %v57 = vpop.xlane.xlu0 %56
  %v58 = vrcp.pop 32.0
  %v59 = vmul.f32 %v54, %v58
  %v60 = vmul.f32 %v57, %v58
  %v61 = vsub.f32 %v47, %v59
  %v62 = vsub.f32 %v48, %v60
  %v63 = vmul.f32 %v61, %v61
  %v64 = vmul.f32 %v62, %v62
  %v65 = vsel %vm51, %v63, 0.0
  %66 = vadd.xlane.f32.xlu0 %v65
  %v67 = vpop.xlane.xlu0 %66
  %v68 = vsel %vm51, %v64, 0.0
  %69 = vadd.xlane.f32.xlu0 %v68
  %v70 = vpop.xlane.xlu0 %69
  %v71 = vmul.f32 %v67, %v58
  %v72 = vmul.f32 %v70, %v58
  %v73 = vadd.f32 %v71, 1e-05
  %v74 = vadd.f32 %v72, 1e-05
  %v75 = vrsqrt.pop %v73
  %v76 = vrsqrt.pop %v74
  %v77 = vmul.f32 %v61, %v75
  %v78 = vmul.f32 %v62, %v76
  %v80 = vlaneseq
  %v81 = vshrl.u32 %v80, 7
  %v82 = vsub.s32 0, %v81
  %v83 = vrot.slane %v49, %v82
  %v85 = vmul.f32 %v77, %v83
  %v86 = vmul.f32 %v78, %v83
  %v88 = vlaneseq
  %v89 = vshrl.u32 %v88, 7
  %v90 = vsub.s32 0, %v89
  %v91 = vrot.slane %v50, %v90
  %v93 = vadd.f32 %v85, %v91
  %v94 = vadd.f32 %v86, %v91
  %v95 = vld [vmem:[%s3] sm:$0xff]
  %v96 = vld [vmem:[%s3 + $0x8] sm:$0xff]
  %v97 = vld [vmem:[%s3 + $0x10] sm:$0xff]
  %v98 = vld [vmem:[%s3 + $0x18] sm:$0xff]
  %v99 = vld [vmem:[%s4] sm:$0x1]
  %v101 = vlaneseq
  %v102 = vshrl.u32 %v101, 7
  %v103 = vsub.s32 0, %v102
  %v104 = vrot.slane %v99, %v103
  %v107 = vsel %vm51, %v93, 0
  %v110 = vsel %vm51, %v94, 0
  %112 = vmatprep.subr.mxu0 0.0
  %113 = vmatpush1.msra.mxu0 %v95
  %114 = vmatprep.subr.mxu0 0.0
  %115 = vmatpush1.msra.mxu0 %v96
  %116 = vmatprep.subr.mxu0 0.0
  %117 = vmatpush1.msra.mxu0 %v97
  %118 = vmatprep.subr.mxu0 0.0
  %119 = vmatpush1.msra.mxu0 %v98
  %120 = vmatprep.subr.mxu0 0.0
  %121 = vmatpush1.msra.mxu0 0.0
  %122 = vmatprep.subr.mxu0 0.0
  %123 = vmatpush1.msra.mxu0 0.0
  %124 = vmatprep.subr.mxu0 0.0
  %125 = vmatpush1.msra.mxu0 0.0
  %126 = vmatprep.subr.mxu0 0.0
  %127 = vmatpush1.msra.mxu0 0.0
  %128 = vmatprep.subr.mxu0 0.0
  %129 = vmatpush1.msra.mxu0 0.0
  %130 = vmatprep.subr.mxu0 0.0
  %131 = vmatpush1.msra.mxu0 0.0
  %132 = vmatprep.subr.mxu0 0.0
  %133 = vmatpush1.msra.mxu0 0.0
  %134 = vmatprep.subr.mxu0 0.0
  %135 = vmatpush1.msra.mxu0 0.0
  %136 = vmatprep.subr.mxu0 0.0
  %137 = vmatpush1.msra.mxu0 0.0
  %138 = vmatprep.subr.mxu0 0.0
  %139 = vmatpush1.msra.mxu0 0.0
  %140 = vmatprep.subr.mxu0 0.0
  %141 = vmatpush1.msra.mxu0 0.0
  %142 = vmatprep.subr.mxu0 0.0
  %143 = vmatpush1.msra.mxu0 0.0
  %144 = vmatprep.subr.mxu0 0.0
  %145 = vmatpush1.msra.mxu0 0.0
  %146 = vmatprep.subr.mxu0 0.0
  %147 = vmatpush1.msra.mxu0 0.0
  %148 = vmatprep.subr.mxu0 0.0
  %149 = vmatpush1.msra.mxu0 0.0
  %150 = vmatprep.subr.mxu0 0.0
  %151 = vmatpush1.msra.mxu0 0.0
  %152 = vmatprep.subr.mxu0 0.0
  %153 = vmatpush1.msra.mxu0 0.0
  %154 = vmatprep.subr.mxu0 0.0
  %155 = vmatpush1.msra.mxu0 0.0
  %156 = vmatprep.subr.mxu0 0.0
  %157 = vmatpush1.msra.mxu0 0.0
  %158 = vmatprep.subr.mxu0 0.0
  %159 = vmatpush1.msra.mxu0 0.0
  %160 = vmatprep.subr.mxu0 0.0
  %161 = vmatpush1.msra.mxu0 0.0
  %162 = vmatprep.subr.mxu0 0.0
  %163 = vmatpush1.msra.mxu0 0.0
  %164 = vmatprep.subr.mxu0 0.0
  %165 = vmatpush1.msra.mxu0 0.0
  %166 = vmatprep.subr.mxu0 0.0
  %167 = vmatpush1.msra.mxu0 0.0
  %168 = vmatprep.subr.mxu0 0.0
  %169 = vmatpush1.msra.mxu0 0.0
  %170 = vmatprep.subr.mxu0 0.0
  %171 = vmatpush1.msra.mxu0 0.0
  %172 = vmatprep.subr.mxu0 0.0
  %173 = vmatpush1.msra.mxu0 0.0
  %174 = vmatprep.subr.mxu0 0.0
  %175 = vmatpush1.msra.mxu0 0.0
  %176 = vmatprep.mubr.f32.mxu0 0.0
  %177 = vmatmul.mubr.f32.gmra.mrb[0].mxu0 %v107
  %v178 = vpop.f32.mrb[0].mxu0
  %v179 = vadd.f32 %v104, %v178
  %v180 = vpop.f32.mrb[0].mxu0
  %181 = vmatprep.mubr.f32.mxu0 0.0
  %182 = vmatmul.mubr.f32.gmra.mrb[0].mxu0 %v110
  %v183 = vpop.f32.mrb[0].mxu0
  %v184 = vadd.f32 %v104, %v183
  %v185 = vpop.f32.mrb[0].mxu0
  %186 = vdwg.mxu0
  %v187 = vld [vmem:[%s7] sm:$0xff]
  %v188 = vld [vmem:[%s7 + $0x8] sm:$0xff]
  %191 = vrot.lane.b32.xlu0 %v179, 96
  %v192 = vpop.permute.xlu0 %191
  %193 = vrot.lane.b32.xlu0 %v184, 96
  %v194 = vpop.permute.xlu0 %193
  %vm195 = vcmask 64512
  %v196 = vsel %vm195, %v179, 0
  %v198 = vsel %vm195, %v184, 0
  %v200 = vsel %vm195, %v192, 0
  %v202 = vsel %vm195, %v194, 0
  %204 = vmatprep.subr.mxu0 0.0
  %205 = vmatpush1.xpose.msra.mxu0 %v200
  %206 = vmatprep.subr.mxu0 0.0
  %207 = vmatpush1.xpose.msra.mxu0 %v202
  %208 = vmatprep.subr.mxu0 0.0
  %209 = vmatpush1.xpose.msra.mxu0 0.0
  %210 = vmatprep.subr.mxu0 0.0
  %211 = vmatpush1.xpose.msra.mxu0 0.0
  %212 = vmatprep.subr.mxu0 0.0
  %213 = vmatpush1.xpose.msra.mxu0 0.0
  %214 = vmatprep.subr.mxu0 0.0
  %215 = vmatpush1.xpose.msra.mxu0 0.0
  %216 = vmatprep.subr.mxu0 0.0
  %217 = vmatpush1.xpose.msra.mxu0 0.0
  %218 = vmatprep.subr.mxu0 0.0
  %219 = vmatpush1.xpose.msra.mxu0 0.0
  %220 = vmatprep.subr.mxu0 0.0
  %221 = vmatpush1.xpose.msra.mxu0 0.0
  %222 = vmatprep.subr.mxu0 0.0
  %223 = vmatpush1.xpose.msra.mxu0 0.0
  %224 = vmatprep.subr.mxu0 0.0
  %225 = vmatpush1.xpose.msra.mxu0 0.0
  %226 = vmatprep.subr.mxu0 0.0
  %227 = vmatpush1.xpose.msra.mxu0 0.0
  %228 = vmatprep.subr.mxu0 0.0
  %229 = vmatpush1.xpose.msra.mxu0 0.0
  %230 = vmatprep.subr.mxu0 0.0
  %231 = vmatpush1.xpose.msra.mxu0 0.0
  %232 = vmatprep.subr.mxu0 0.0
  %233 = vmatpush1.xpose.msra.mxu0 0.0
  %234 = vmatprep.subr.mxu0 0.0
  %235 = vmatpush1.xpose.msra.mxu0 0.0
  %236 = vmatprep.subr.mxu0 0.0
  %237 = vmatpush1.xpose.msra.mxu0 0.0
  %238 = vmatprep.subr.mxu0 0.0
  %239 = vmatpush1.xpose.msra.mxu0 0.0
  %240 = vmatprep.subr.mxu0 0.0
  %241 = vmatpush1.xpose.msra.mxu0 0.0
  %242 = vmatprep.subr.mxu0 0.0
  %243 = vmatpush1.xpose.msra.mxu0 0.0
  %244 = vmatprep.subr.mxu0 0.0
  %245 = vmatpush1.xpose.msra.mxu0 0.0
  %246 = vmatprep.subr.mxu0 0.0
  %247 = vmatpush1.xpose.msra.mxu0 0.0
  %248 = vmatprep.subr.mxu0 0.0
  %249 = vmatpush1.xpose.msra.mxu0 0.0
  %250 = vmatprep.subr.mxu0 0.0
  %251 = vmatpush1.xpose.msra.mxu0 0.0
  %252 = vmatprep.subr.mxu0 0.0
  %253 = vmatpush1.xpose.msra.mxu0 0.0
  %254 = vmatprep.subr.mxu0 0.0
  %255 = vmatpush1.xpose.msra.mxu0 0.0
  %256 = vmatprep.subr.mxu0 0.0
  %257 = vmatpush1.xpose.msra.mxu0 0.0
  %258 = vmatprep.subr.mxu0 0.0
  %259 = vmatpush1.xpose.msra.mxu0 0.0
  %260 = vmatprep.subr.mxu0 0.0
  %261 = vmatpush1.xpose.msra.mxu0 0.0
  %262 = vmatprep.subr.mxu0 0.0
  %263 = vmatpush1.xpose.msra.mxu0 0.0
  %264 = vmatprep.subr.mxu0 0.0
  %265 = vmatpush1.xpose.msra.mxu0 0.0
  %266 = vmatprep.subr.mxu0 0.0
  %267 = vmatpush1.xpose.msra.mxu0 0.0
  %268 = vmatprep.mubr.f32.mxu0 0.0
  %269 = vmatmul.mubr.f32.gmra.mrb[0].mxu0 %v196
  %v270 = vpop.f32.mrb[0].mxu0
  %v271 = vadd.f32 %v187, %v270
  %v272 = vpop.f32.mrb[0].mxu0
  %273 = vmatprep.mubr.f32.mxu0 0.0
  %274 = vmatmul.mubr.f32.gmra.mrb[0].mxu0 %v198
  %v275 = vpop.f32.mrb[0].mxu0
  %v276 = vadd.f32 %v188, %v275
  %v277 = vpop.f32.mrb[0].mxu0
  %278 = vdwg.mxu0
  %vm279 = vcmask 130048
  %v280 = vsel %vm279, %v271, -inf
  %281 = vmax.xlane.f32.xlu0 %v280
  %v282 = vpop.xlane.xlu0 %281
  %v283 = vsel %vm279, %v276, -inf
  %284 = vmax.xlane.f32.xlu0 %v283
  %v285 = vpop.xlane.xlu0 %284
  %v286 = vsub.f32 %v271, %v282
  %v287 = vsub.f32 %v276, %v285
  %v288 = vmul.f32 %v286, 1.442695
  %v289 = vpow.pop %v288
  %v290 = vmul.f32 %v287, 1.442695
  %v291 = vpow.pop %v290
  %v292 = vsel %vm279, %v289, 0.0
  %293 = vadd.xlane.f32.xlu0 %v292
  %v294 = vpop.xlane.xlu0 %293
  %v295 = vsel %vm279, %v291, 0.0
  %296 = vadd.xlane.f32.xlu0 %v295
  %v297 = vpop.xlane.xlu0 %296
  %v298 = vrcp.pop %v294
  %v299 = vrcp.pop %v297
  %v300 = vmul.f32 %v289, %v298
  %v301 = vmul.f32 %v291, %v299
  %302 = vrot.lane.b32.xlu0 %v179, 64
  %v303 = vpop.permute.xlu0 %302
  %304 = vrot.lane.b32.xlu0 %v184, 64
  %v305 = vpop.permute.xlu0 %304
  %v309 = vsel %vm279, %v300, 0
  %v312 = vsel %vm279, %v301, 0
  %314 = vmatprep.subr.mxu0 0.0
  %315 = vmatpush1.msra.mxu0 %v303
  %316 = vmatprep.subr.mxu0 0.0
  %317 = vmatpush1.msra.mxu0 %v305
  %318 = vmatprep.subr.mxu0 0.0
  %319 = vmatpush1.msra.mxu0 0.0
  %320 = vmatprep.subr.mxu0 0.0
  %321 = vmatpush1.msra.mxu0 0.0
  %322 = vmatprep.subr.mxu0 0.0
  %323 = vmatpush1.msra.mxu0 0.0
  %324 = vmatprep.subr.mxu0 0.0
  %325 = vmatpush1.msra.mxu0 0.0
  %326 = vmatprep.subr.mxu0 0.0
  %327 = vmatpush1.msra.mxu0 0.0
  %328 = vmatprep.subr.mxu0 0.0
  %329 = vmatpush1.msra.mxu0 0.0
  %330 = vmatprep.subr.mxu0 0.0
  %331 = vmatpush1.msra.mxu0 0.0
  %332 = vmatprep.subr.mxu0 0.0
  %333 = vmatpush1.msra.mxu0 0.0
  %334 = vmatprep.subr.mxu0 0.0
  %335 = vmatpush1.msra.mxu0 0.0
  %336 = vmatprep.subr.mxu0 0.0
  %337 = vmatpush1.msra.mxu0 0.0
  %338 = vmatprep.subr.mxu0 0.0
  %339 = vmatpush1.msra.mxu0 0.0
  %340 = vmatprep.subr.mxu0 0.0
  %341 = vmatpush1.msra.mxu0 0.0
  %342 = vmatprep.subr.mxu0 0.0
  %343 = vmatpush1.msra.mxu0 0.0
  %344 = vmatprep.subr.mxu0 0.0
  %345 = vmatpush1.msra.mxu0 0.0
  %346 = vmatprep.subr.mxu0 0.0
  %347 = vmatpush1.msra.mxu0 0.0
  %348 = vmatprep.subr.mxu0 0.0
  %349 = vmatpush1.msra.mxu0 0.0
  %350 = vmatprep.subr.mxu0 0.0
  %351 = vmatpush1.msra.mxu0 0.0
  %352 = vmatprep.subr.mxu0 0.0
  %353 = vmatpush1.msra.mxu0 0.0
  %354 = vmatprep.subr.mxu0 0.0
  %355 = vmatpush1.msra.mxu0 0.0
  %356 = vmatprep.subr.mxu0 0.0
  %357 = vmatpush1.msra.mxu0 0.0
  %358 = vmatprep.subr.mxu0 0.0
  %359 = vmatpush1.msra.mxu0 0.0
  %360 = vmatprep.subr.mxu0 0.0
  %361 = vmatpush1.msra.mxu0 0.0
  %362 = vmatprep.subr.mxu0 0.0
  %363 = vmatpush1.msra.mxu0 0.0
  %364 = vmatprep.subr.mxu0 0.0
  %365 = vmatpush1.msra.mxu0 0.0
  %366 = vmatprep.subr.mxu0 0.0
  %367 = vmatpush1.msra.mxu0 0.0
  %368 = vmatprep.subr.mxu0 0.0
  %369 = vmatpush1.msra.mxu0 0.0
  %370 = vmatprep.subr.mxu0 0.0
  %371 = vmatpush1.msra.mxu0 0.0
  %372 = vmatprep.subr.mxu0 0.0
  %373 = vmatpush1.msra.mxu0 0.0
  %374 = vmatprep.subr.mxu0 0.0
  %375 = vmatpush1.msra.mxu0 0.0
  %376 = vmatprep.subr.mxu0 0.0
  %377 = vmatpush1.msra.mxu0 0.0
  %378 = vmatprep.mubr.f32.mxu0 0.0
  %379 = vmatmul.mubr.f32.gmra.mrb[0].mxu0 %v309
  %v380 = vpop.f32.mrb[0].mxu0
  %v381 = vadd.f32 0.0, %v380
  %v382 = vpop.f32.mrb[0].mxu0
  %383 = vmatprep.mubr.f32.mxu0 0.0
  %384 = vmatmul.mubr.f32.gmra.mrb[0].mxu0 %v312
  %v385 = vpop.f32.mrb[0].mxu0
  %v386 = vadd.f32 0.0, %v385
  %v387 = vpop.f32.mrb[0].mxu0
  %388 = vdwg.mxu0
  %389 = vrot.lane.b32.xlu0 %v179, 120
  %v390 = vpop.permute.xlu0 %389
  %391 = vrot.lane.b32.xlu0 %v184, 120
  %v392 = vpop.permute.xlu0 %391
  %393 = vrot.lane.b32.xlu0 %v179, 88
  %v394 = vpop.permute.xlu0 %393
  %395 = vrot.lane.b32.xlu0 %v184, 88
  %v396 = vpop.permute.xlu0 %395
  %v397 = vsel %vm195, %v390, 0
  %v399 = vsel %vm195, %v392, 0
  %v401 = vsel %vm195, %v394, 0
  %v403 = vsel %vm195, %v396, 0
  %405 = vmatprep.subr.mxu0 0.0
  %406 = vmatpush1.xpose.msra.mxu0 %v401
  %407 = vmatprep.subr.mxu0 0.0
  %408 = vmatpush1.xpose.msra.mxu0 %v403
  %409 = vmatprep.subr.mxu0 0.0
  %410 = vmatpush1.xpose.msra.mxu0 0.0
  %411 = vmatprep.subr.mxu0 0.0
  %412 = vmatpush1.xpose.msra.mxu0 0.0
  %413 = vmatprep.subr.mxu0 0.0
  %414 = vmatpush1.xpose.msra.mxu0 0.0
  %415 = vmatprep.subr.mxu0 0.0
  %416 = vmatpush1.xpose.msra.mxu0 0.0
  %417 = vmatprep.subr.mxu0 0.0
  %418 = vmatpush1.xpose.msra.mxu0 0.0
  %419 = vmatprep.subr.mxu0 0.0
  %420 = vmatpush1.xpose.msra.mxu0 0.0
  %421 = vmatprep.subr.mxu0 0.0
  %422 = vmatpush1.xpose.msra.mxu0 0.0
  %423 = vmatprep.subr.mxu0 0.0
  %424 = vmatpush1.xpose.msra.mxu0 0.0
  %425 = vmatprep.subr.mxu0 0.0
  %426 = vmatpush1.xpose.msra.mxu0 0.0
  %427 = vmatprep.subr.mxu0 0.0
  %428 = vmatpush1.xpose.msra.mxu0 0.0
  %429 = vmatprep.subr.mxu0 0.0
  %430 = vmatpush1.xpose.msra.mxu0 0.0
  %431 = vmatprep.subr.mxu0 0.0
  %432 = vmatpush1.xpose.msra.mxu0 0.0
  %433 = vmatprep.subr.mxu0 0.0
  %434 = vmatpush1.xpose.msra.mxu0 0.0
  %435 = vmatprep.subr.mxu0 0.0
  %436 = vmatpush1.xpose.msra.mxu0 0.0
  %437 = vmatprep.subr.mxu0 0.0
  %438 = vmatpush1.xpose.msra.mxu0 0.0
  %439 = vmatprep.subr.mxu0 0.0
  %440 = vmatpush1.xpose.msra.mxu0 0.0
  %441 = vmatprep.subr.mxu0 0.0
  %442 = vmatpush1.xpose.msra.mxu0 0.0
  %443 = vmatprep.subr.mxu0 0.0
  %444 = vmatpush1.xpose.msra.mxu0 0.0
  %445 = vmatprep.subr.mxu0 0.0
  %446 = vmatpush1.xpose.msra.mxu0 0.0
  %447 = vmatprep.subr.mxu0 0.0
  %448 = vmatpush1.xpose.msra.mxu0 0.0
  %449 = vmatprep.subr.mxu0 0.0
  %450 = vmatpush1.xpose.msra.mxu0 0.0
  %451 = vmatprep.subr.mxu0 0.0
  %452 = vmatpush1.xpose.msra.mxu0 0.0
  %453 = vmatprep.subr.mxu0 0.0
  %454 = vmatpush1.xpose.msra.mxu0 0.0
  %455 = vmatprep.subr.mxu0 0.0
  %456 = vmatpush1.xpose.msra.mxu0 0.0
  %457 = vmatprep.subr.mxu0 0.0
  %458 = vmatpush1.xpose.msra.mxu0 0.0
  %459 = vmatprep.subr.mxu0 0.0
  %460 = vmatpush1.xpose.msra.mxu0 0.0
  %461 = vmatprep.subr.mxu0 0.0
  %462 = vmatpush1.xpose.msra.mxu0 0.0
  %463 = vmatprep.subr.mxu0 0.0
  %464 = vmatpush1.xpose.msra.mxu0 0.0
  %465 = vmatprep.subr.mxu0 0.0
  %466 = vmatpush1.xpose.msra.mxu0 0.0
  %467 = vmatprep.subr.mxu0 0.0
  %468 = vmatpush1.xpose.msra.mxu0 0.0
  %469 = vmatprep.mubr.f32.mxu0 0.0
  %470 = vmatmul.mubr.f32.gmra.mrb[0].mxu0 %v397
  %v471 = vpop.f32.mrb[0].mxu0
  %v472 = vadd.f32 %v187, %v471
  %v473 = vpop.f32.mrb[0].mxu0
  %474 = vmatprep.mubr.f32.mxu0 0.0
  %475 = vmatmul.mubr.f32.gmra.mrb[0].mxu0 %v399
  %v476 = vpop.f32.mrb[0].mxu0
  %v477 = vadd.f32 %v188, %v476
  %v478 = vpop.f32.mrb[0].mxu0
  %479 = vdwg.mxu0
  %v480 = vsel %vm279, %v472, -inf
  %481 = vmax.xlane.f32.xlu0 %v480
  %v482 = vpop.xlane.xlu0 %481
  %v483 = vsel %vm279, %v477, -inf
  %484 = vmax.xlane.f32.xlu0 %v483
  %v485 = vpop.xlane.xlu0 %484
  %v486 = vsub.f32 %v472, %v482
  %v487 = vsub.f32 %v477, %v485
  %v488 = vmul.f32 %v486, 1.442695
  %v489 = vpow.pop %v488
  %v490 = vmul.f32 %v487, 1.442695
  %v491 = vpow.pop %v490
  %v492 = vsel %vm279, %v489, 0.0
  %493 = vadd.xlane.f32.xlu0 %v492
  %v494 = vpop.xlane.xlu0 %493
  %v495 = vsel %vm279, %v491, 0.0
  %496 = vadd.xlane.f32.xlu0 %v495
  %v497 = vpop.xlane.xlu0 %496
  %v498 = vrcp.pop %v494
  %v499 = vrcp.pop %v497
  %v500 = vmul.f32 %v489, %v498
  %v501 = vmul.f32 %v491, %v499
  %502 = vrot.lane.b32.xlu0 %v179, 56
  %v503 = vpop.permute.xlu0 %502
  %504 = vrot.lane.b32.xlu0 %v184, 56
  %v505 = vpop.permute.xlu0 %504
  %v509 = vsel %vm279, %v500, 0
  %v512 = vsel %vm279, %v501, 0
  %514 = vmatprep.subr.mxu0 0.0
  %515 = vmatpush1.msra.mxu0 %v503
  %516 = vmatprep.subr.mxu0 0.0
  %517 = vmatpush1.msra.mxu0 %v505
  %518 = vmatprep.subr.mxu0 0.0
  %519 = vmatpush1.msra.mxu0 0.0
  %520 = vmatprep.subr.mxu0 0.0
  %521 = vmatpush1.msra.mxu0 0.0
  %522 = vmatprep.subr.mxu0 0.0
  %523 = vmatpush1.msra.mxu0 0.0
  %524 = vmatprep.subr.mxu0 0.0
  %525 = vmatpush1.msra.mxu0 0.0
  %526 = vmatprep.subr.mxu0 0.0
  %527 = vmatpush1.msra.mxu0 0.0
  %528 = vmatprep.subr.mxu0 0.0
  %529 = vmatpush1.msra.mxu0 0.0
  %530 = vmatprep.subr.mxu0 0.0
  %531 = vmatpush1.msra.mxu0 0.0
  %532 = vmatprep.subr.mxu0 0.0
  %533 = vmatpush1.msra.mxu0 0.0
  %534 = vmatprep.subr.mxu0 0.0
  %535 = vmatpush1.msra.mxu0 0.0
  %536 = vmatprep.subr.mxu0 0.0
  %537 = vmatpush1.msra.mxu0 0.0
  %538 = vmatprep.subr.mxu0 0.0
  %539 = vmatpush1.msra.mxu0 0.0
  %540 = vmatprep.subr.mxu0 0.0
  %541 = vmatpush1.msra.mxu0 0.0
  %542 = vmatprep.subr.mxu0 0.0
  %543 = vmatpush1.msra.mxu0 0.0
  %544 = vmatprep.subr.mxu0 0.0
  %545 = vmatpush1.msra.mxu0 0.0
  %546 = vmatprep.subr.mxu0 0.0
  %547 = vmatpush1.msra.mxu0 0.0
  %548 = vmatprep.subr.mxu0 0.0
  %549 = vmatpush1.msra.mxu0 0.0
  %550 = vmatprep.subr.mxu0 0.0
  %551 = vmatpush1.msra.mxu0 0.0
  %552 = vmatprep.subr.mxu0 0.0
  %553 = vmatpush1.msra.mxu0 0.0
  %554 = vmatprep.subr.mxu0 0.0
  %555 = vmatpush1.msra.mxu0 0.0
  %556 = vmatprep.subr.mxu0 0.0
  %557 = vmatpush1.msra.mxu0 0.0
  %558 = vmatprep.subr.mxu0 0.0
  %559 = vmatpush1.msra.mxu0 0.0
  %560 = vmatprep.subr.mxu0 0.0
  %561 = vmatpush1.msra.mxu0 0.0
  %562 = vmatprep.subr.mxu0 0.0
  %563 = vmatpush1.msra.mxu0 0.0
  %564 = vmatprep.subr.mxu0 0.0
  %565 = vmatpush1.msra.mxu0 0.0
  %566 = vmatprep.subr.mxu0 0.0
  %567 = vmatpush1.msra.mxu0 0.0
  %568 = vmatprep.subr.mxu0 0.0
  %569 = vmatpush1.msra.mxu0 0.0
  %570 = vmatprep.subr.mxu0 0.0
  %571 = vmatpush1.msra.mxu0 0.0
  %572 = vmatprep.subr.mxu0 0.0
  %573 = vmatpush1.msra.mxu0 0.0
  %574 = vmatprep.subr.mxu0 0.0
  %575 = vmatpush1.msra.mxu0 0.0
  %576 = vmatprep.subr.mxu0 0.0
  %577 = vmatpush1.msra.mxu0 0.0
  %578 = vmatprep.mubr.f32.mxu0 0.0
  %579 = vmatmul.mubr.f32.gmra.mrb[0].mxu0 %v509
  %v580 = vpop.f32.mrb[0].mxu0
  %v581 = vadd.f32 0.0, %v580
  %v582 = vpop.f32.mrb[0].mxu0
  %583 = vmatprep.mubr.f32.mxu0 0.0
  %584 = vmatmul.mubr.f32.gmra.mrb[0].mxu0 %v512
  %v585 = vpop.f32.mrb[0].mxu0
  %v586 = vadd.f32 0.0, %v585
  %v587 = vpop.f32.mrb[0].mxu0
  %588 = vdwg.mxu0
  %589 = vrot.lane.b32.xlu0 %v179, 112
  %v590 = vpop.permute.xlu0 %589
  %591 = vrot.lane.b32.xlu0 %v184, 112
  %v592 = vpop.permute.xlu0 %591
  %593 = vrot.lane.b32.xlu0 %v179, 80
  %v594 = vpop.permute.xlu0 %593
  %595 = vrot.lane.b32.xlu0 %v184, 80
  %v596 = vpop.permute.xlu0 %595
  %v597 = vsel %vm195, %v590, 0
  %v599 = vsel %vm195, %v592, 0
  %v601 = vsel %vm195, %v594, 0
  %v603 = vsel %vm195, %v596, 0
  %605 = vmatprep.subr.mxu0 0.0
  %606 = vmatpush1.xpose.msra.mxu0 %v601
  %607 = vmatprep.subr.mxu0 0.0
  %608 = vmatpush1.xpose.msra.mxu0 %v603
  %609 = vmatprep.subr.mxu0 0.0
  %610 = vmatpush1.xpose.msra.mxu0 0.0
  %611 = vmatprep.subr.mxu0 0.0
  %612 = vmatpush1.xpose.msra.mxu0 0.0
  %613 = vmatprep.subr.mxu0 0.0
  %614 = vmatpush1.xpose.msra.mxu0 0.0
  %615 = vmatprep.subr.mxu0 0.0
  %616 = vmatpush1.xpose.msra.mxu0 0.0
  %617 = vmatprep.subr.mxu0 0.0
  %618 = vmatpush1.xpose.msra.mxu0 0.0
  %619 = vmatprep.subr.mxu0 0.0
  %620 = vmatpush1.xpose.msra.mxu0 0.0
  %621 = vmatprep.subr.mxu0 0.0
  %622 = vmatpush1.xpose.msra.mxu0 0.0
  %623 = vmatprep.subr.mxu0 0.0
  %624 = vmatpush1.xpose.msra.mxu0 0.0
  %625 = vmatprep.subr.mxu0 0.0
  %626 = vmatpush1.xpose.msra.mxu0 0.0
  %627 = vmatprep.subr.mxu0 0.0
  %628 = vmatpush1.xpose.msra.mxu0 0.0
  %629 = vmatprep.subr.mxu0 0.0
  %630 = vmatpush1.xpose.msra.mxu0 0.0
  %631 = vmatprep.subr.mxu0 0.0
  %632 = vmatpush1.xpose.msra.mxu0 0.0
  %633 = vmatprep.subr.mxu0 0.0
  %634 = vmatpush1.xpose.msra.mxu0 0.0
  %635 = vmatprep.subr.mxu0 0.0
  %636 = vmatpush1.xpose.msra.mxu0 0.0
  %637 = vmatprep.subr.mxu0 0.0
  %638 = vmatpush1.xpose.msra.mxu0 0.0
  %639 = vmatprep.subr.mxu0 0.0
  %640 = vmatpush1.xpose.msra.mxu0 0.0
  %641 = vmatprep.subr.mxu0 0.0
  %642 = vmatpush1.xpose.msra.mxu0 0.0
  %643 = vmatprep.subr.mxu0 0.0
  %644 = vmatpush1.xpose.msra.mxu0 0.0
  %645 = vmatprep.subr.mxu0 0.0
  %646 = vmatpush1.xpose.msra.mxu0 0.0
  %647 = vmatprep.subr.mxu0 0.0
  %648 = vmatpush1.xpose.msra.mxu0 0.0
  %649 = vmatprep.subr.mxu0 0.0
  %650 = vmatpush1.xpose.msra.mxu0 0.0
  %651 = vmatprep.subr.mxu0 0.0
  %652 = vmatpush1.xpose.msra.mxu0 0.0
  %653 = vmatprep.subr.mxu0 0.0
  %654 = vmatpush1.xpose.msra.mxu0 0.0
  %655 = vmatprep.subr.mxu0 0.0
  %656 = vmatpush1.xpose.msra.mxu0 0.0
  %657 = vmatprep.subr.mxu0 0.0
  %658 = vmatpush1.xpose.msra.mxu0 0.0
  %659 = vmatprep.subr.mxu0 0.0
  %660 = vmatpush1.xpose.msra.mxu0 0.0
  %661 = vmatprep.subr.mxu0 0.0
  %662 = vmatpush1.xpose.msra.mxu0 0.0
  %663 = vmatprep.subr.mxu0 0.0
  %664 = vmatpush1.xpose.msra.mxu0 0.0
  %665 = vmatprep.subr.mxu0 0.0
  %666 = vmatpush1.xpose.msra.mxu0 0.0
  %667 = vmatprep.subr.mxu0 0.0
  %668 = vmatpush1.xpose.msra.mxu0 0.0
  %669 = vmatprep.mubr.f32.mxu0 0.0
  %670 = vmatmul.mubr.f32.gmra.mrb[0].mxu0 %v597
  %v671 = vpop.f32.mrb[0].mxu0
  %v672 = vadd.f32 %v187, %v671
  %v673 = vpop.f32.mrb[0].mxu0
  %674 = vmatprep.mubr.f32.mxu0 0.0
  %675 = vmatmul.mubr.f32.gmra.mrb[0].mxu0 %v599
  %v676 = vpop.f32.mrb[0].mxu0
  %v677 = vadd.f32 %v188, %v676
  %v678 = vpop.f32.mrb[0].mxu0
  %679 = vdwg.mxu0
  %v680 = vsel %vm279, %v672, -inf
  %681 = vmax.xlane.f32.xlu0 %v680
  %v682 = vpop.xlane.xlu0 %681
  %v683 = vsel %vm279, %v677, -inf
  %684 = vmax.xlane.f32.xlu0 %v683
  %v685 = vpop.xlane.xlu0 %684
  %v686 = vsub.f32 %v672, %v682
  %v687 = vsub.f32 %v677, %v685
  %v688 = vmul.f32 %v686, 1.442695
  %v689 = vpow.pop %v688
  %v690 = vmul.f32 %v687, 1.442695
  %v691 = vpow.pop %v690
  %v692 = vsel %vm279, %v689, 0.0
  %693 = vadd.xlane.f32.xlu0 %v692
  %v694 = vpop.xlane.xlu0 %693
  %v695 = vsel %vm279, %v691, 0.0
  %696 = vadd.xlane.f32.xlu0 %v695
  %v697 = vpop.xlane.xlu0 %696
  %v698 = vrcp.pop %v694
  %v699 = vrcp.pop %v697
  %v700 = vmul.f32 %v689, %v698
  %v701 = vmul.f32 %v691, %v699
  %702 = vrot.lane.b32.xlu0 %v179, 48
  %v703 = vpop.permute.xlu0 %702
  %704 = vrot.lane.b32.xlu0 %v184, 48
  %v705 = vpop.permute.xlu0 %704
  %v709 = vsel %vm279, %v700, 0
  %v712 = vsel %vm279, %v701, 0
  %714 = vmatprep.subr.mxu0 0.0
  %715 = vmatpush1.msra.mxu0 %v703
  %716 = vmatprep.subr.mxu0 0.0
  %717 = vmatpush1.msra.mxu0 %v705
  %718 = vmatprep.subr.mxu0 0.0
  %719 = vmatpush1.msra.mxu0 0.0
  %720 = vmatprep.subr.mxu0 0.0
  %721 = vmatpush1.msra.mxu0 0.0
  %722 = vmatprep.subr.mxu0 0.0
  %723 = vmatpush1.msra.mxu0 0.0
  %724 = vmatprep.subr.mxu0 0.0
  %725 = vmatpush1.msra.mxu0 0.0
  %726 = vmatprep.subr.mxu0 0.0
  %727 = vmatpush1.msra.mxu0 0.0
  %728 = vmatprep.subr.mxu0 0.0
  %729 = vmatpush1.msra.mxu0 0.0
  %730 = vmatprep.subr.mxu0 0.0
  %731 = vmatpush1.msra.mxu0 0.0
  %732 = vmatprep.subr.mxu0 0.0
  %733 = vmatpush1.msra.mxu0 0.0
  %734 = vmatprep.subr.mxu0 0.0
  %735 = vmatpush1.msra.mxu0 0.0
  %736 = vmatprep.subr.mxu0 0.0
  %737 = vmatpush1.msra.mxu0 0.0
  %738 = vmatprep.subr.mxu0 0.0
  %739 = vmatpush1.msra.mxu0 0.0
  %740 = vmatprep.subr.mxu0 0.0
  %741 = vmatpush1.msra.mxu0 0.0
  %742 = vmatprep.subr.mxu0 0.0
  %743 = vmatpush1.msra.mxu0 0.0
  %744 = vmatprep.subr.mxu0 0.0
  %745 = vmatpush1.msra.mxu0 0.0
  %746 = vmatprep.subr.mxu0 0.0
  %747 = vmatpush1.msra.mxu0 0.0
  %748 = vmatprep.subr.mxu0 0.0
  %749 = vmatpush1.msra.mxu0 0.0
  %750 = vmatprep.subr.mxu0 0.0
  %751 = vmatpush1.msra.mxu0 0.0
  %752 = vmatprep.subr.mxu0 0.0
  %753 = vmatpush1.msra.mxu0 0.0
  %754 = vmatprep.subr.mxu0 0.0
  %755 = vmatpush1.msra.mxu0 0.0
  %756 = vmatprep.subr.mxu0 0.0
  %757 = vmatpush1.msra.mxu0 0.0
  %758 = vmatprep.subr.mxu0 0.0
  %759 = vmatpush1.msra.mxu0 0.0
  %760 = vmatprep.subr.mxu0 0.0
  %761 = vmatpush1.msra.mxu0 0.0
  %762 = vmatprep.subr.mxu0 0.0
  %763 = vmatpush1.msra.mxu0 0.0
  %764 = vmatprep.subr.mxu0 0.0
  %765 = vmatpush1.msra.mxu0 0.0
  %766 = vmatprep.subr.mxu0 0.0
  %767 = vmatpush1.msra.mxu0 0.0
  %768 = vmatprep.subr.mxu0 0.0
  %769 = vmatpush1.msra.mxu0 0.0
  %770 = vmatprep.subr.mxu0 0.0
  %771 = vmatpush1.msra.mxu0 0.0
  %772 = vmatprep.subr.mxu0 0.0
  %773 = vmatpush1.msra.mxu0 0.0
  %774 = vmatprep.subr.mxu0 0.0
  %775 = vmatpush1.msra.mxu0 0.0
  %776 = vmatprep.subr.mxu0 0.0
  %777 = vmatpush1.msra.mxu0 0.0
  %778 = vmatprep.mubr.f32.mxu0 0.0
  %779 = vmatmul.mubr.f32.gmra.mrb[0].mxu0 %v709
  %v780 = vpop.f32.mrb[0].mxu0
  %v781 = vadd.f32 0.0, %v780
  %v782 = vpop.f32.mrb[0].mxu0
  %783 = vmatprep.mubr.f32.mxu0 0.0
  %784 = vmatmul.mubr.f32.gmra.mrb[0].mxu0 %v712
  %v785 = vpop.f32.mrb[0].mxu0
  %v786 = vadd.f32 0.0, %v785
  %v787 = vpop.f32.mrb[0].mxu0
  %788 = vdwg.mxu0
  %789 = vrot.lane.b32.xlu0 %v179, 104
  %v790 = vpop.permute.xlu0 %789
  %791 = vrot.lane.b32.xlu0 %v184, 104
  %v792 = vpop.permute.xlu0 %791
  %793 = vrot.lane.b32.xlu0 %v179, 72
  %v794 = vpop.permute.xlu0 %793
  %795 = vrot.lane.b32.xlu0 %v184, 72
  %v796 = vpop.permute.xlu0 %795
  %v797 = vsel %vm195, %v790, 0
  %v799 = vsel %vm195, %v792, 0
  %v801 = vsel %vm195, %v794, 0
  %v803 = vsel %vm195, %v796, 0
  %805 = vmatprep.subr.mxu0 0.0
  %806 = vmatpush1.xpose.msra.mxu0 %v801
  %807 = vmatprep.subr.mxu0 0.0
  %808 = vmatpush1.xpose.msra.mxu0 %v803
  %809 = vmatprep.subr.mxu0 0.0
  %810 = vmatpush1.xpose.msra.mxu0 0.0
  %811 = vmatprep.subr.mxu0 0.0
  %812 = vmatpush1.xpose.msra.mxu0 0.0
  %813 = vmatprep.subr.mxu0 0.0
  %814 = vmatpush1.xpose.msra.mxu0 0.0
  %815 = vmatprep.subr.mxu0 0.0
  %816 = vmatpush1.xpose.msra.mxu0 0.0
  %817 = vmatprep.subr.mxu0 0.0
  %818 = vmatpush1.xpose.msra.mxu0 0.0
  %819 = vmatprep.subr.mxu0 0.0
  %820 = vmatpush1.xpose.msra.mxu0 0.0
  %821 = vmatprep.subr.mxu0 0.0
  %822 = vmatpush1.xpose.msra.mxu0 0.0
  %823 = vmatprep.subr.mxu0 0.0
  %824 = vmatpush1.xpose.msra.mxu0 0.0
  %825 = vmatprep.subr.mxu0 0.0
  %826 = vmatpush1.xpose.msra.mxu0 0.0
  %827 = vmatprep.subr.mxu0 0.0
  %828 = vmatpush1.xpose.msra.mxu0 0.0
  %829 = vmatprep.subr.mxu0 0.0
  %830 = vmatpush1.xpose.msra.mxu0 0.0
  %831 = vmatprep.subr.mxu0 0.0
  %832 = vmatpush1.xpose.msra.mxu0 0.0
  %833 = vmatprep.subr.mxu0 0.0
  %834 = vmatpush1.xpose.msra.mxu0 0.0
  %835 = vmatprep.subr.mxu0 0.0
  %836 = vmatpush1.xpose.msra.mxu0 0.0
  %837 = vmatprep.subr.mxu0 0.0
  %838 = vmatpush1.xpose.msra.mxu0 0.0
  %839 = vmatprep.subr.mxu0 0.0
  %840 = vmatpush1.xpose.msra.mxu0 0.0
  %841 = vmatprep.subr.mxu0 0.0
  %842 = vmatpush1.xpose.msra.mxu0 0.0
  %843 = vmatprep.subr.mxu0 0.0
  %844 = vmatpush1.xpose.msra.mxu0 0.0
  %845 = vmatprep.subr.mxu0 0.0
  %846 = vmatpush1.xpose.msra.mxu0 0.0
  %847 = vmatprep.subr.mxu0 0.0
  %848 = vmatpush1.xpose.msra.mxu0 0.0
  %849 = vmatprep.subr.mxu0 0.0
  %850 = vmatpush1.xpose.msra.mxu0 0.0
  %851 = vmatprep.subr.mxu0 0.0
  %852 = vmatpush1.xpose.msra.mxu0 0.0
  %853 = vmatprep.subr.mxu0 0.0
  %854 = vmatpush1.xpose.msra.mxu0 0.0
  %855 = vmatprep.subr.mxu0 0.0
  %856 = vmatpush1.xpose.msra.mxu0 0.0
  %857 = vmatprep.subr.mxu0 0.0
  %858 = vmatpush1.xpose.msra.mxu0 0.0
  %859 = vmatprep.subr.mxu0 0.0
  %860 = vmatpush1.xpose.msra.mxu0 0.0
  %861 = vmatprep.subr.mxu0 0.0
  %862 = vmatpush1.xpose.msra.mxu0 0.0
  %863 = vmatprep.subr.mxu0 0.0
  %864 = vmatpush1.xpose.msra.mxu0 0.0
  %865 = vmatprep.subr.mxu0 0.0
  %866 = vmatpush1.xpose.msra.mxu0 0.0
  %867 = vmatprep.subr.mxu0 0.0
  %868 = vmatpush1.xpose.msra.mxu0 0.0
  %869 = vmatprep.mubr.f32.mxu0 0.0
  %870 = vmatmul.mubr.f32.gmra.mrb[0].mxu0 %v797
  %v871 = vpop.f32.mrb[0].mxu0
  %v872 = vadd.f32 %v187, %v871
  %v873 = vpop.f32.mrb[0].mxu0
  %874 = vmatprep.mubr.f32.mxu0 0.0
  %875 = vmatmul.mubr.f32.gmra.mrb[0].mxu0 %v799
  %v876 = vpop.f32.mrb[0].mxu0
  %v877 = vadd.f32 %v188, %v876
  %v878 = vpop.f32.mrb[0].mxu0
  %879 = vdwg.mxu0
  %v880 = vsel %vm279, %v872, -inf
  %881 = vmax.xlane.f32.xlu0 %v880
  %v882 = vpop.xlane.xlu0 %881
  %v883 = vsel %vm279, %v877, -inf
  %884 = vmax.xlane.f32.xlu0 %v883
  %v885 = vpop.xlane.xlu0 %884
  %v886 = vsub.f32 %v872, %v882
  %v887 = vsub.f32 %v877, %v885
  %v888 = vmul.f32 %v886, 1.442695
  %v889 = vpow.pop %v888
  %v890 = vmul.f32 %v887, 1.442695
  %v891 = vpow.pop %v890
  %v892 = vsel %vm279, %v889, 0.0
  %893 = vadd.xlane.f32.xlu0 %v892
  %v894 = vpop.xlane.xlu0 %893
  %v895 = vsel %vm279, %v891, 0.0
  %896 = vadd.xlane.f32.xlu0 %v895
  %v897 = vpop.xlane.xlu0 %896
  %v898 = vrcp.pop %v894
  %v899 = vrcp.pop %v897
  %v900 = vmul.f32 %v889, %v898
  %v901 = vmul.f32 %v891, %v899
  %902 = vrot.lane.b32.xlu0 %v179, 40
  %v903 = vpop.permute.xlu0 %902
  %904 = vrot.lane.b32.xlu0 %v184, 40
  %v905 = vpop.permute.xlu0 %904
  %v909 = vsel %vm279, %v900, 0
  %v912 = vsel %vm279, %v901, 0
  %914 = vmatprep.subr.mxu0 0.0
  %915 = vmatpush1.msra.mxu0 %v903
  %916 = vmatprep.subr.mxu0 0.0
  %917 = vmatpush1.msra.mxu0 %v905
  %918 = vmatprep.subr.mxu0 0.0
  %919 = vmatpush1.msra.mxu0 0.0
  %920 = vmatprep.subr.mxu0 0.0
  %921 = vmatpush1.msra.mxu0 0.0
  %922 = vmatprep.subr.mxu0 0.0
  %923 = vmatpush1.msra.mxu0 0.0
  %924 = vmatprep.subr.mxu0 0.0
  %925 = vmatpush1.msra.mxu0 0.0
  %926 = vmatprep.subr.mxu0 0.0
  %927 = vmatpush1.msra.mxu0 0.0
  %928 = vmatprep.subr.mxu0 0.0
  %929 = vmatpush1.msra.mxu0 0.0
  %930 = vmatprep.subr.mxu0 0.0
  %931 = vmatpush1.msra.mxu0 0.0
  %932 = vmatprep.subr.mxu0 0.0
  %933 = vmatpush1.msra.mxu0 0.0
  %934 = vmatprep.subr.mxu0 0.0
  %935 = vmatpush1.msra.mxu0 0.0
  %936 = vmatprep.subr.mxu0 0.0
  %937 = vmatpush1.msra.mxu0 0.0
  %938 = vmatprep.subr.mxu0 0.0
  %939 = vmatpush1.msra.mxu0 0.0
  %940 = vmatprep.subr.mxu0 0.0
  %941 = vmatpush1.msra.mxu0 0.0
  %942 = vmatprep.subr.mxu0 0.0
  %943 = vmatpush1.msra.mxu0 0.0
  %944 = vmatprep.subr.mxu0 0.0
  %945 = vmatpush1.msra.mxu0 0.0
  %946 = vmatprep.subr.mxu0 0.0
  %947 = vmatpush1.msra.mxu0 0.0
  %948 = vmatprep.subr.mxu0 0.0
  %949 = vmatpush1.msra.mxu0 0.0
  %950 = vmatprep.subr.mxu0 0.0
  %951 = vmatpush1.msra.mxu0 0.0
  %952 = vmatprep.subr.mxu0 0.0
  %953 = vmatpush1.msra.mxu0 0.0
  %954 = vmatprep.subr.mxu0 0.0
  %955 = vmatpush1.msra.mxu0 0.0
  %956 = vmatprep.subr.mxu0 0.0
  %957 = vmatpush1.msra.mxu0 0.0
  %958 = vmatprep.subr.mxu0 0.0
  %959 = vmatpush1.msra.mxu0 0.0
  %960 = vmatprep.subr.mxu0 0.0
  %961 = vmatpush1.msra.mxu0 0.0
  %962 = vmatprep.subr.mxu0 0.0
  %963 = vmatpush1.msra.mxu0 0.0
  %964 = vmatprep.subr.mxu0 0.0
  %965 = vmatpush1.msra.mxu0 0.0
  %966 = vmatprep.subr.mxu0 0.0
  %967 = vmatpush1.msra.mxu0 0.0
  %968 = vmatprep.subr.mxu0 0.0
  %969 = vmatpush1.msra.mxu0 0.0
  %970 = vmatprep.subr.mxu0 0.0
  %971 = vmatpush1.msra.mxu0 0.0
  %972 = vmatprep.subr.mxu0 0.0
  %973 = vmatpush1.msra.mxu0 0.0
  %974 = vmatprep.subr.mxu0 0.0
  %975 = vmatpush1.msra.mxu0 0.0
  %976 = vmatprep.subr.mxu0 0.0
  %977 = vmatpush1.msra.mxu0 0.0
  %978 = vmatprep.mubr.f32.mxu0 0.0
  %979 = vmatmul.mubr.f32.gmra.mrb[0].mxu0 %v909
  %v980 = vpop.f32.mrb[0].mxu0
  %v981 = vadd.f32 0.0, %v980
  %v982 = vpop.f32.mrb[0].mxu0
  %983 = vmatprep.mubr.f32.mxu0 0.0
  %984 = vmatmul.mubr.f32.gmra.mrb[0].mxu0 %v912
  %v985 = vpop.f32.mrb[0].mxu0
  %v986 = vadd.f32 0.0, %v985
  %v987 = vpop.f32.mrb[0].mxu0
  %988 = vdwg.mxu0
  %991 = vrot.lane.b32.xlu0 %v581, 8
  %v992 = vpop.permute.xlu0 %991
  %993 = vrot.lane.b32.xlu0 %v586, 8
  %v994 = vpop.permute.xlu0 %993
  %999 = vrot.lane.b32.xlu0 %v781, 16
  %v1000 = vpop.permute.xlu0 %999
  %1001 = vrot.lane.b32.xlu0 %v786, 16
  %v1002 = vpop.permute.xlu0 %1001
  %1007 = vrot.lane.b32.xlu0 %v981, 24
  %v1008 = vpop.permute.xlu0 %1007
  %1009 = vrot.lane.b32.xlu0 %v986, 24
  %v1010 = vpop.permute.xlu0 %1009
  %v1013 = vsel %vm195, %v381, %v992
  %v1014 = vsel %vm195, %v386, %v994
  %v1015 = vsel %vm279, %v1013, %v1000
  %v1016 = vsel %vm279, %v1014, %v1002
  %vm1017 = vcmask 195584
  %v1018 = vsel %vm1017, %v1015, %v1008
  %v1019 = vsel %vm1017, %v1016, %v1010
  %v1020 = vld [vmem:[%s5] sm:$0xff]
  %v1021 = vld [vmem:[%s5 + $0x8] sm:$0xff]
  %v1022 = vld [vmem:[%s5 + $0x10] sm:$0xff]
  %v1023 = vld [vmem:[%s5 + $0x18] sm:$0xff]
  %v1024 = vld [vmem:[%s6] sm:$0x1]
  %v1026 = vlaneseq
  %v1027 = vshrl.u32 %v1026, 7
  %v1028 = vsub.s32 0, %v1027
  %v1029 = vrot.slane %v1024, %v1028
  %v1032 = vsel %vm51, %v1018, 0
  %v1035 = vsel %vm51, %v1019, 0
  %1037 = vmatprep.subr.mxu0 0.0
  %1038 = vmatpush1.msra.mxu0 %v1020
  %1039 = vmatprep.subr.mxu0 0.0
  %1040 = vmatpush1.msra.mxu0 %v1021
  %1041 = vmatprep.subr.mxu0 0.0
  %1042 = vmatpush1.msra.mxu0 %v1022
  %1043 = vmatprep.subr.mxu0 0.0
  %1044 = vmatpush1.msra.mxu0 %v1023
  %1045 = vmatprep.subr.mxu0 0.0
  %1046 = vmatpush1.msra.mxu0 0.0
  %1047 = vmatprep.subr.mxu0 0.0
  %1048 = vmatpush1.msra.mxu0 0.0
  %1049 = vmatprep.subr.mxu0 0.0
  %1050 = vmatpush1.msra.mxu0 0.0
  %1051 = vmatprep.subr.mxu0 0.0
  %1052 = vmatpush1.msra.mxu0 0.0
  %1053 = vmatprep.subr.mxu0 0.0
  %1054 = vmatpush1.msra.mxu0 0.0
  %1055 = vmatprep.subr.mxu0 0.0
  %1056 = vmatpush1.msra.mxu0 0.0
  %1057 = vmatprep.subr.mxu0 0.0
  %1058 = vmatpush1.msra.mxu0 0.0
  %1059 = vmatprep.subr.mxu0 0.0
  %1060 = vmatpush1.msra.mxu0 0.0
  %1061 = vmatprep.subr.mxu0 0.0
  %1062 = vmatpush1.msra.mxu0 0.0
  %1063 = vmatprep.subr.mxu0 0.0
  %1064 = vmatpush1.msra.mxu0 0.0
  %1065 = vmatprep.subr.mxu0 0.0
  %1066 = vmatpush1.msra.mxu0 0.0
  %1067 = vmatprep.subr.mxu0 0.0
  %1068 = vmatpush1.msra.mxu0 0.0
  %1069 = vmatprep.subr.mxu0 0.0
  %1070 = vmatpush1.msra.mxu0 0.0
  %1071 = vmatprep.subr.mxu0 0.0
  %1072 = vmatpush1.msra.mxu0 0.0
  %1073 = vmatprep.subr.mxu0 0.0
  %1074 = vmatpush1.msra.mxu0 0.0
  %1075 = vmatprep.subr.mxu0 0.0
  %1076 = vmatpush1.msra.mxu0 0.0
  %1077 = vmatprep.subr.mxu0 0.0
  %1078 = vmatpush1.msra.mxu0 0.0
  %1079 = vmatprep.subr.mxu0 0.0
  %1080 = vmatpush1.msra.mxu0 0.0
  %1081 = vmatprep.subr.mxu0 0.0
  %1082 = vmatpush1.msra.mxu0 0.0
  %1083 = vmatprep.subr.mxu0 0.0
  %1084 = vmatpush1.msra.mxu0 0.0
  %1085 = vmatprep.subr.mxu0 0.0
  %1086 = vmatpush1.msra.mxu0 0.0
  %1087 = vmatprep.subr.mxu0 0.0
  %1088 = vmatpush1.msra.mxu0 0.0
  %1089 = vmatprep.subr.mxu0 0.0
  %1090 = vmatpush1.msra.mxu0 0.0
  %1091 = vmatprep.subr.mxu0 0.0
  %1092 = vmatpush1.msra.mxu0 0.0
  %1093 = vmatprep.subr.mxu0 0.0
  %1094 = vmatpush1.msra.mxu0 0.0
  %1095 = vmatprep.subr.mxu0 0.0
  %1096 = vmatpush1.msra.mxu0 0.0
  %1097 = vmatprep.subr.mxu0 0.0
  %1098 = vmatpush1.msra.mxu0 0.0
  %1099 = vmatprep.subr.mxu0 0.0
  %1100 = vmatpush1.msra.mxu0 0.0
  %1101 = vmatprep.mubr.f32.mxu0 0.0
  %1102 = vmatmul.mubr.f32.gmra.mrb[0].mxu0 %v1032
  %v1103 = vpop.f32.mrb[0].mxu0
  %v1104 = vadd.f32 %v1029, %v1103
  %v1105 = vpop.f32.mrb[0].mxu0
  %1106 = vmatprep.mubr.f32.mxu0 0.0
  %1107 = vmatmul.mubr.f32.gmra.mrb[0].mxu0 %v1035
  %v1108 = vpop.f32.mrb[0].mxu0
  %v1109 = vadd.f32 %v1029, %v1108
  %v1110 = vpop.f32.mrb[0].mxu0
  %1111 = vdwg.mxu0
  %v1112 = vadd.f32 %v47, %v1104
  %v1113 = vadd.f32 %v48, %v1109
  %1114 = vrot.lane.b32.xlu0 %v179, 32
  %v1115 = vpop.permute.xlu0 %1114
  %1116 = vrot.lane.b32.xlu0 %v184, 32
  %v1117 = vpop.permute.xlu0 %1116
  %v1120 = vadd.f32 %v1112, %v1115
  %v1121 = vadd.f32 %v1113, %v1117
  %v1122 = vld [vmem:[%s8] sm:$0x1]
  %v1123 = vld [vmem:[%s9] sm:$0x1]
  %v1124 = vsel %vm51, %v1120, 0.0
  %1125 = vadd.xlane.f32.xlu0 %v1124
  %v1126 = vpop.xlane.xlu0 %1125
  %v1127 = vsel %vm51, %v1121, 0.0
  %1128 = vadd.xlane.f32.xlu0 %v1127
  %v1129 = vpop.xlane.xlu0 %1128
  %v1130 = vmul.f32 %v1126, %v58
  %v1131 = vmul.f32 %v1129, %v58
  %v1132 = vsub.f32 %v1120, %v1130
  %v1133 = vsub.f32 %v1121, %v1131
  %v1134 = vmul.f32 %v1132, %v1132
  %v1135 = vmul.f32 %v1133, %v1133
  %v1136 = vsel %vm51, %v1134, 0.0
  %1137 = vadd.xlane.f32.xlu0 %v1136
  %v1138 = vpop.xlane.xlu0 %1137
  %v1139 = vsel %vm51, %v1135, 0.0
  %1140 = vadd.xlane.f32.xlu0 %v1139
  %v1141 = vpop.xlane.xlu0 %1140
  %v1142 = vmul.f32 %v1138, %v58
  %v1143 = vmul.f32 %v1141, %v58
  %v1144 = vadd.f32 %v1142, 1e-05
  %v1145 = vadd.f32 %v1143, 1e-05
  %v1146 = vrsqrt.pop %v1144
  %v1147 = vrsqrt.pop %v1145
  %v1148 = vmul.f32 %v1132, %v1146
  %v1149 = vmul.f32 %v1133, %v1147
  %v1151 = vlaneseq
  %v1152 = vshrl.u32 %v1151, 7
  %v1153 = vsub.s32 0, %v1152
  %v1154 = vrot.slane %v1122, %v1153
  %v1156 = vmul.f32 %v1148, %v1154
  %v1157 = vmul.f32 %v1149, %v1154
  %v1159 = vlaneseq
  %v1160 = vshrl.u32 %v1159, 7
  %v1161 = vsub.s32 0, %v1160
  %v1162 = vrot.slane %v1123, %v1161
  %v1164 = vadd.f32 %v1156, %v1162
  %v1165 = vadd.f32 %v1157, %v1162
  %v1166 = vld [vmem:[%s10] sm:$0xff]
  %v1167 = vld [vmem:[%s10 + $0x8] sm:$0xff]
  %v1168 = vld [vmem:[%s10 + $0x10] sm:$0xff]
  %v1169 = vld [vmem:[%s10 + $0x18] sm:$0xff]
  %v1170 = vld [vmem:[%s10 + $0x20] sm:$0xff]
  %v1171 = vld [vmem:[%s10 + $0x28] sm:$0xff]
  %v1172 = vld [vmem:[%s10 + $0x30] sm:$0xff]
  %v1173 = vld [vmem:[%s10 + $0x38] sm:$0xff]
  %v1174 = vld [vmem:[%s11] sm:$0x3]
  %v1176 = vlaneseq
  %v1177 = vshrl.u32 %v1176, 7
  %v1178 = vsub.s32 0, %v1177
  %v1179 = vrot.slane %v1174, %v1178
  %v1180 = vlaneseq
  %v1181 = vshrl.u32 %v1180, 7
  %v1182 = vsub.s32 1, %v1181
  %v1183 = vrot.slane %v1174, %v1182
  %v1187 = vsel %vm51, %v1164, 0
  %v1190 = vsel %vm51, %v1165, 0
  %1192 = vmatprep.subr.mxu0 %v1167
  %1193 = vmatpush1.msra.mxu0 %v1166
  %1194 = vmatprep.subr.mxu0 %v1169
  %1195 = vmatpush1.msra.mxu0 %v1168
  %1196 = vmatprep.subr.mxu0 %v1171
  %1197 = vmatpush1.msra.mxu0 %v1170
  %1198 = vmatprep.subr.mxu0 %v1173
  %1199 = vmatpush1.msra.mxu0 %v1172
  %1200 = vmatprep.subr.mxu0 0.0
  %1201 = vmatpush1.msra.mxu0 0.0
  %1202 = vmatprep.subr.mxu0 0.0
  %1203 = vmatpush1.msra.mxu0 0.0
  %1204 = vmatprep.subr.mxu0 0.0
  %1205 = vmatpush1.msra.mxu0 0.0
  %1206 = vmatprep.subr.mxu0 0.0
  %1207 = vmatpush1.msra.mxu0 0.0
  %1208 = vmatprep.subr.mxu0 0.0
  %1209 = vmatpush1.msra.mxu0 0.0
  %1210 = vmatprep.subr.mxu0 0.0
  %1211 = vmatpush1.msra.mxu0 0.0
  %1212 = vmatprep.subr.mxu0 0.0
  %1213 = vmatpush1.msra.mxu0 0.0
  %1214 = vmatprep.subr.mxu0 0.0
  %1215 = vmatpush1.msra.mxu0 0.0
  %1216 = vmatprep.subr.mxu0 0.0
  %1217 = vmatpush1.msra.mxu0 0.0
  %1218 = vmatprep.subr.mxu0 0.0
  %1219 = vmatpush1.msra.mxu0 0.0
  %1220 = vmatprep.subr.mxu0 0.0
  %1221 = vmatpush1.msra.mxu0 0.0
  %1222 = vmatprep.subr.mxu0 0.0
  %1223 = vmatpush1.msra.mxu0 0.0
  %1224 = vmatprep.subr.mxu0 0.0
  %1225 = vmatpush1.msra.mxu0 0.0
  %1226 = vmatprep.subr.mxu0 0.0
  %1227 = vmatpush1.msra.mxu0 0.0
  %1228 = vmatprep.subr.mxu0 0.0
  %1229 = vmatpush1.msra.mxu0 0.0
  %1230 = vmatprep.subr.mxu0 0.0
  %1231 = vmatpush1.msra.mxu0 0.0
  %1232 = vmatprep.subr.mxu0 0.0
  %1233 = vmatpush1.msra.mxu0 0.0
  %1234 = vmatprep.subr.mxu0 0.0
  %1235 = vmatpush1.msra.mxu0 0.0
  %1236 = vmatprep.subr.mxu0 0.0
  %1237 = vmatpush1.msra.mxu0 0.0
  %1238 = vmatprep.subr.mxu0 0.0
  %1239 = vmatpush1.msra.mxu0 0.0
  %1240 = vmatprep.subr.mxu0 0.0
  %1241 = vmatpush1.msra.mxu0 0.0
  %1242 = vmatprep.subr.mxu0 0.0
  %1243 = vmatpush1.msra.mxu0 0.0
  %1244 = vmatprep.subr.mxu0 0.0
  %1245 = vmatpush1.msra.mxu0 0.0
  %1246 = vmatprep.subr.mxu0 0.0
  %1247 = vmatpush1.msra.mxu0 0.0
  %1248 = vmatprep.subr.mxu0 0.0
  %1249 = vmatpush1.msra.mxu0 0.0
  %1250 = vmatprep.subr.mxu0 0.0
  %1251 = vmatpush1.msra.mxu0 0.0
  %1252 = vmatprep.subr.mxu0 0.0
  %1253 = vmatpush1.msra.mxu0 0.0
  %1254 = vmatprep.subr.mxu0 0.0
  %1255 = vmatpush1.msra.mxu0 0.0
  %1256 = vmatprep.mubr.f32.mxu0 0.0
  %1257 = vmatmul.mubr.f32.gmra.mrb[0].mxu0 %v1187
  %v1258 = vpop.f32.mrb[0].mxu0
  %v1259 = vadd.f32 %v1179, %v1258
  %v1260 = vpop.f32.mrb[0].mxu0
  %v1261 = vadd.f32 %v1183, %v1260
  %1262 = vmatprep.mubr.f32.mxu0 0.0
  %1263 = vmatmul.mubr.f32.gmra.mrb[0].mxu0 %v1190
  %v1264 = vpop.f32.mrb[0].mxu0
  %v1265 = vadd.f32 %v1179, %v1264
  %v1266 = vpop.f32.mrb[0].mxu0
  %v1267 = vadd.f32 %v1183, %v1266
  %1268 = vdwg.mxu0
  %v1269 = vmul.f32 %v1259, 0.5
  %v1270 = vmul.f32 %v1265, 0.5
  %v1271 = vmul.f32 %v1259, 0.70710677
  %v1272 = vmul.f32 %v1265, 0.70710677
  %v1273 = verf.f32.pop %v1271
  %v1274 = verf.f32.pop %v1272
  %v1275 = vadd.f32 %v1273, 1.0
  %v1276 = vadd.f32 %v1274, 1.0
  %v1277 = vmul.f32 %v1269, %v1275
  %v1278 = vmul.f32 %v1270, %v1276
  %v1279 = vld [vmem:[%s12] sm:$0xff]
  %v1280 = vld [vmem:[%s12 + $0x8] sm:$0xff]
  %v1281 = vld [vmem:[%s12 + $0x10] sm:$0xff]
  %v1282 = vld [vmem:[%s12 + $0x18] sm:$0xff]
  %v1283 = vld [vmem:[%s12 + $0x20] sm:$0xff]
  %v1284 = vld [vmem:[%s12 + $0x28] sm:$0xff]
  %v1285 = vld [vmem:[%s12 + $0x30] sm:$0xff]
  %v1286 = vld [vmem:[%s12 + $0x38] sm:$0xff]
  %v1287 = vld [vmem:[%s12 + $0x40] sm:$0xff]
  %v1288 = vld [vmem:[%s12 + $0x48] sm:$0xff]
  %v1289 = vld [vmem:[%s12 + $0x50] sm:$0xff]
  %v1290 = vld [vmem:[%s12 + $0x58] sm:$0xff]
  %v1291 = vld [vmem:[%s12 + $0x60] sm:$0xff]
  %v1292 = vld [vmem:[%s12 + $0x68] sm:$0xff]
  %v1293 = vld [vmem:[%s12 + $0x70] sm:$0xff]
  %v1294 = vld [vmem:[%s12 + $0x78] sm:$0xff]
  %v1295 = vld [vmem:[%s13] sm:$0x1]
  %v1297 = vlaneseq
  %v1298 = vshrl.u32 %v1297, 7
  %v1299 = vsub.s32 0, %v1298
  %v1300 = vrot.slane %v1295, %v1299
  %1302 = vmatprep.subr.mxu0 0.0
  %1303 = vmatpush1.msra.mxu0 %v1279
  %1304 = vmatprep.subr.mxu0 0.0
  %1305 = vmatpush1.msra.mxu0 %v1280
  %1306 = vmatprep.subr.mxu0 0.0
  %1307 = vmatpush1.msra.mxu0 %v1281
  %1308 = vmatprep.subr.mxu0 0.0
  %1309 = vmatpush1.msra.mxu0 %v1282
  %1310 = vmatprep.subr.mxu0 0.0
  %1311 = vmatpush1.msra.mxu0 %v1283
  %1312 = vmatprep.subr.mxu0 0.0
  %1313 = vmatpush1.msra.mxu0 %v1284
  %1314 = vmatprep.subr.mxu0 0.0
  %1315 = vmatpush1.msra.mxu0 %v1285
  %1316 = vmatprep.subr.mxu0 0.0
  %1317 = vmatpush1.msra.mxu0 %v1286
  %1318 = vmatprep.subr.mxu0 0.0
  %1319 = vmatpush1.msra.mxu0 %v1287
  %1320 = vmatprep.subr.mxu0 0.0
  %1321 = vmatpush1.msra.mxu0 %v1288
  %1322 = vmatprep.subr.mxu0 0.0
  %1323 = vmatpush1.msra.mxu0 %v1289
  %1324 = vmatprep.subr.mxu0 0.0
  %1325 = vmatpush1.msra.mxu0 %v1290
  %1326 = vmatprep.subr.mxu0 0.0
  %1327 = vmatpush1.msra.mxu0 %v1291
  %1328 = vmatprep.subr.mxu0 0.0
  %1329 = vmatpush1.msra.mxu0 %v1292
  %1330 = vmatprep.subr.mxu0 0.0
  %1331 = vmatpush1.msra.mxu0 %v1293
  %1332 = vmatprep.subr.mxu0 0.0
  %1333 = vmatpush1.msra.mxu0 %v1294
  %1334 = vmatprep.subr.mxu0 0.0
  %1335 = vmatpush1.msra.mxu0 0.0
  %1336 = vmatprep.subr.mxu0 0.0
  %1337 = vmatpush1.msra.mxu0 0.0
  %1338 = vmatprep.subr.mxu0 0.0
  %1339 = vmatpush1.msra.mxu0 0.0
  %1340 = vmatprep.subr.mxu0 0.0
  %1341 = vmatpush1.msra.mxu0 0.0
  %1342 = vmatprep.subr.mxu0 0.0
  %1343 = vmatpush1.msra.mxu0 0.0
  %1344 = vmatprep.subr.mxu0 0.0
  %1345 = vmatpush1.msra.mxu0 0.0
  %1346 = vmatprep.subr.mxu0 0.0
  %1347 = vmatpush1.msra.mxu0 0.0
  %1348 = vmatprep.subr.mxu0 0.0
  %1349 = vmatpush1.msra.mxu0 0.0
  %1350 = vmatprep.subr.mxu0 0.0
  %1351 = vmatpush1.msra.mxu0 0.0
  %1352 = vmatprep.subr.mxu0 0.0
  %1353 = vmatpush1.msra.mxu0 0.0
  %1354 = vmatprep.subr.mxu0 0.0
  %1355 = vmatpush1.msra.mxu0 0.0
  %1356 = vmatprep.subr.mxu0 0.0
  %1357 = vmatpush1.msra.mxu0 0.0
  %1358 = vmatprep.subr.mxu0 0.0
  %1359 = vmatpush1.msra.mxu0 0.0
  %1360 = vmatprep.subr.mxu0 0.0
  %1361 = vmatpush1.msra.mxu0 0.0
  %1362 = vmatprep.subr.mxu0 0.0
  %1363 = vmatpush1.msra.mxu0 0.0
  %1364 = vmatprep.subr.mxu0 0.0
  %1365 = vmatpush1.msra.mxu0 0.0
  %1366 = vmatprep.mubr.f32.mxu0 0.0
  %1367 = vmatmul.mubr.f32.gmra.mrb[0].mxu0 %v1277
  %v1368 = vpop.f32.mrb[0].mxu0
  %v1369 = vadd.f32 %v1300, %v1368
  %v1370 = vpop.f32.mrb[0].mxu0
  %1371 = vmatprep.mubr.f32.mxu0 0.0
  %1372 = vmatmul.mubr.f32.gmra.mrb[0].mxu0 %v1278
  %v1373 = vpop.f32.mrb[0].mxu0
  %v1374 = vadd.f32 %v1300, %v1373
  %v1375 = vpop.f32.mrb[0].mxu0
  %1376 = vdwg.mxu0
  %v1377 = vadd.f32 %v1369, %v1261
  %v1378 = vadd.f32 %v1374, %v1267
  %v1379 = vadd.f32 %v1120, %v1377
  %v1380 = vadd.f32 %v1121, %v1378
  %1381 = vst.msk [vmem:[%s14] sm:$0xff] %vm51, %v1379
  %1382 = vst.msk [vmem:[%s14 + $0x8] sm:$0xff] %vm51, %v1380
  // Predicated region
  $region58: #{block_forward.1} parent=0 // pred_check
    _
  $region59: #{block_forward.1} parent=0 // pred_check_branch
    %1384 = sbr.rel (0) target = $region61
  $region60: #{block_forward.1} parent=0 // pred_region
    _
  $region61: #{block_forward.1} parent=0 // pred_fallthru
    _
  // Predicated region
  $region62: #{block_forward.1} parent=0 // pred_check
    _
  $region63: #{block_forward.1} parent=0 // pred_check_branch
    %1386 = sbr.rel (0) target = $region65
  $region64: #{block_forward.1} parent=0 // pred_region
    _
  $region65: #{block_forward.1} parent=0 // pred_fallthru
    _

</llo_original>
